<compile_context>
chip_gen: v7x
topology: tpu7x:2x2x1
jax: 0.10.0
libtpu: 0.0.40
codegen_flags: <defaults>
</compile_context>

<pallas_src>
import functools

import jax
import jax.numpy as jnp
from jax.experimental import pallas as pl
from jax.experimental.pallas import tpu as pltpu


def _round_up(n: int, m: int) -> int:
    return ((n + m - 1) // m) * m


def mlp3_kernel(x_ref, w1_ref, b1_ref, w2_ref, b2_ref, w3_ref, b3_ref, o_ref):
    # x arrives in its native dtype; cast to bf16 in-kernel (VPU filler that
    # hides under the MXU) instead of a separate full-batch XLA cast pass.
    x = x_ref[...].astype(jnp.bfloat16)

    h1 = jnp.dot(x, w1_ref[...], preferred_element_type=jnp.float32)
    h1 = jnp.maximum(h1 + b1_ref[...], 0.0)      # f32 bias + ReLU; dropout1 == identity (eval)
    h1 = h1.astype(jnp.bfloat16)                 # back to bf16 for the next MXU pass

    h2 = jnp.dot(h1, w2_ref[...], preferred_element_type=jnp.float32)
    h2 = jnp.maximum(h2 + b2_ref[...], 0.0)      # dropout2 == identity (eval)
    h2 = h2.astype(jnp.bfloat16)

    out = jnp.dot(h2, w3_ref[...], preferred_element_type=jnp.float32)
    o_ref[...] = (out + b3_ref[...]).astype(o_ref.dtype)


def prepare_params(params):
    """One-time (outside the per-call path) conversion of parameters:
    bf16 weights stored as (in, out) so the kernel computes x @ W + b
    (== torch's x @ W.T + b after transposing torch weights), f32 (1, out) biases."""
    bf = jnp.bfloat16
    return dict(
        w1=params["w1"].astype(bf),
        w2=params["w2"].astype(bf),
        w3=params["w3"].astype(bf),
        b1=params["b1"].astype(jnp.float32).reshape(1, -1),
        b2=params["b2"].astype(jnp.float32).reshape(1, -1),
        b3=params["b3"].astype(jnp.float32).reshape(1, -1),
    )


@functools.partial(jax.jit, static_argnames=("tm", "out_dtype"))
def mlp3_forward(x, params, *, tm=512, out_dtype=None):
    """x: (B, D_in) in its native dtype. params: output of prepare_params()."""
    w1, b1, w2, b2, w3, b3 = (params[k] for k in ("w1", "b1", "w2", "b2", "w3", "b3"))
    B, D_in = x.shape
    H = w1.shape[1]
    D_out = w3.shape[1]
    out_dtype = x.dtype if out_dtype is None else jnp.dtype(out_dtype)

    # Batch tile: big enough to amortize the ~0.35 us per-grid-step overhead,
    # but keep >= 2 grid steps when B allows so v7x's two TensorCores both get
    # work. Sublane dim must stay a multiple of 8 (lane dims D_in/H/D_out are
    # already multiples of 128).
    TM = tm
    if B >= 256:
        TM = min(TM, _round_up((B + 1) // 2, 128))   # >= 2 grid steps
    else:
        TM = min(TM, _round_up(max(B, 8), 8))
    grid = (pl.cdiv(B, TM),)                          # no jnp.pad: Pallas clips the last block

    # Resident-weight spec: constant block index across the grid, single
    # buffered (never re-fetched, so a double buffer is pure VMEM waste).
    def resident(a):
        return pl.BlockSpec(a.shape, lambda i: (0,) * a.ndim,
                            pipeline_mode=pl.Buffered(1))

    # VMEM budget: true footprint + ~25% headroom, floored for Mosaic internal
    # scratch, capped below v7x's 64 MiB physical VMEM.
    weight_bytes = sum(a.size * a.dtype.itemsize
                       for a in (w1, w2, w3, b1, b2, b3))          # x1 buffer (resident)
    io_bytes = 2 * (TM * D_in * x.dtype.itemsize
                    + TM * D_out * out_dtype.itemsize)             # double-buffered x / out tiles
    interm_bytes = 2 * TM * H * 4                                  # f32 h1/h2 live at once (upper bound)
    footprint = weight_bytes + io_bytes + interm_bytes
    vmem_limit = int(min(48 << 20, max(16 << 20, int(1.25 * footprint))))

    cost = pl.CostEstimate(
        flops=2 * B * (D_in * H + H * H + H * D_out),
        transcendentals=0,
        bytes_accessed=(x.size * x.dtype.itemsize
                        + weight_bytes
                        + B * D_out * out_dtype.itemsize),
    )

    return pl.pallas_call(
        mlp3_kernel,
        out_shape=jax.ShapeDtypeStruct((B, D_out), out_dtype),
        grid_spec=pltpu.PrefetchScalarGridSpec(
            num_scalar_prefetch=0,
            grid=grid,
            in_specs=[
                pl.BlockSpec((TM, D_in), lambda i: (i, 0)),   # x tile (auto double-buffered)
                resident(w1), resident(b1),
                resident(w2), resident(b2),
                resident(w3), resident(b3),
            ],
            out_specs=pl.BlockSpec((TM, D_out), lambda i: (i, 0)),
        ),
        compiler_params=pltpu.CompilerParams(
            dimension_semantics=("parallel",),
            vmem_limit_bytes=vmem_limit,
        ),
        cost_estimate=cost,
    )(x, w1, b1, w2, b2, w3, b3)


def init_params(key, input_dim, hidden_dim, output_dim):
    """Deterministic init mimicking nn.Linear's U(-1/sqrt(fan_in), 1/sqrt(fan_in)).
    Weights stored as (in, out) for x @ W."""
    ks = jax.random.split(key, 6)

    def linear(kw, kb, fan_in, fan_out):
        bound = 1.0 / jnp.sqrt(fan_in)
        w = jax.random.uniform(kw, (fan_in, fan_out), jnp.float32, -bound, bound)
        b = jax.random.uniform(kb, (1, fan_out), jnp.float32, -bound, bound)
        return w, b

    w1, b1 = linear(ks[0], ks[1], input_dim, hidden_dim)
    w2, b2 = linear(ks[2], ks[3], hidden_dim, hidden_dim)
    w3, b3 = linear(ks[4], ks[5], hidden_dim, output_dim)
    return dict(w1=w1, b1=b1, w2=w2, b2=b2, w3=w3, b3=b3)


def mlp3_reference(x, p):
    """Reference mirroring the kernel's precision: bf16 matmul inputs, f32 acc."""
    bf = jnp.bfloat16

    def lin(a, w, b):
        return jnp.dot(a.astype(bf), w.astype(bf),
                       preferred_element_type=jnp.float32) + b.astype(jnp.float32)

    h1 = jnp.maximum(lin(x, p["w1"], p["b1"]), 0.0)
    h2 = jnp.maximum(lin(h1, p["w2"], p["b2"]), 0.0)
    return lin(h2, p["w3"], p["b3"])


if __name__ == "__main__":
    # Small shapes consistent with the module (defaults are 512; scaled to 256
    # while keeping (8,128)-friendly, lane-dense dims). B=1024 with TM=512 ->
    # grid of 2 batch tiles, exercising the pipelined / megacore-parallel path.
    B, D_IN, D_HID, D_OUT = 1024, 256, 256, 256

    key = jax.random.PRNGKey(0)
    kx, kp = jax.random.split(key)
    x = jax.random.normal(kx, (B, D_IN), dtype=jnp.float32)
    params_f32 = init_params(kp, D_IN, D_HID, D_OUT)
    params = prepare_params(params_f32)          # one-time bf16 weight cache

    out = mlp3_forward(x, params, tm=512)
    out = jax.block_until_ready(out)

    ref = mlp3_reference(x, params_f32)
    assert out.shape == (B, D_OUT)
    assert jnp.allclose(out, ref, atol=2e-2, rtol=2e-2), "mismatch vs reference"

    print("KERNEL_OK")
</pallas_src>

<mosaic_0001>
module attributes {stable_mosaic.version = 11 : i64} {
  func.func @mlp3_kernel(%arg0: i32, %arg1: memref<512x256xf32, #tpu.memory_space<vmem>>, %arg2: memref<256x256xbf16, #tpu.memory_space<vmem>>, %arg3: memref<1x256xf32, #tpu.memory_space<vmem>>, %arg4: memref<256x256xbf16, #tpu.memory_space<vmem>>, %arg5: memref<1x256xf32, #tpu.memory_space<vmem>>, %arg6: memref<256x256xbf16, #tpu.memory_space<vmem>>, %arg7: memref<1x256xf32, #tpu.memory_space<vmem>>, %arg8: memref<512x256xf32, #tpu.memory_space<vmem>>) attributes {dimension_semantics = [#tpu.dimension_semantics<parallel>], iteration_bounds = array<i64: 2>, scalar_prefetch = 0 : i64, scratch_operands = 0 : i64, tpu.core_type = #tpu.core_type<tc>, window_params = [{transform_indices = @transform_0, window_bounds = array<i64: 512, 256>}, {pipeline_mode = #tpu.pipeline_mode<synchronous>, transform_indices = @transform_1, window_bounds = array<i64: 256, 256>}, {pipeline_mode = #tpu.pipeline_mode<synchronous>, transform_indices = @transform_2, window_bounds = array<i64: 1, 256>}, {pipeline_mode = #tpu.pipeline_mode<synchronous>, transform_indices = @transform_3, window_bounds = array<i64: 256, 256>}, {pipeline_mode = #tpu.pipeline_mode<synchronous>, transform_indices = @transform_4, window_bounds = array<i64: 1, 256>}, {pipeline_mode = #tpu.pipeline_mode<synchronous>, transform_indices = @transform_5, window_bounds = array<i64: 256, 256>}, {pipeline_mode = #tpu.pipeline_mode<synchronous>, transform_indices = @transform_6, window_bounds = array<i64: 1, 256>}, {transform_indices = @transform_7, window_bounds = array<i64: 512, 256>}]} {
    %c0 = arith.constant 0 : index
    %c0_0 = arith.constant 0 : index
    %0 = vector.load %arg1[%c0, %c0_0] : memref<512x256xf32, #tpu.memory_space<vmem>>, vector<512x256xf32>
    %1 = arith.truncf %0 : vector<512x256xf32> to vector<512x256xbf16>
    %c0_1 = arith.constant 0 : index
    %c0_2 = arith.constant 0 : index
    %2 = vector.load %arg2[%c0_1, %c0_2] : memref<256x256xbf16, #tpu.memory_space<vmem>>, vector<256x256xbf16>
    %cst = arith.constant dense<0.000000e+00> : vector<512x256xf32>
    %3 = tpu.matmul %1, %2, %cst {dimension_numbers = #tpu.dot_dimension_numbers<[1], [0], [0], [1], [0, 0, 1, 1], [], []>} : vector<512x256xbf16>, vector<256x256xbf16>, vector<512x256xf32> -> vector<512x256xf32>
    %c0_3 = arith.constant 0 : index
    %c0_4 = arith.constant 0 : index
    %4 = vector.load %arg3[%c0_3, %c0_4] : memref<1x256xf32, #tpu.memory_space<vmem>>, vector<1x256xf32>
    %5 = vector.broadcast %4 : vector<1x256xf32> to vector<512x256xf32>
    %6 = arith.addf %3, %5 : vector<512x256xf32>
    %cst_5 = arith.constant 0.000000e+00 : f32
    %7 = vector.broadcast %cst_5 : f32 to vector<512x256xf32>
    %8 = arith.maximumf %6, %7 : vector<512x256xf32>
    %9 = arith.truncf %8 : vector<512x256xf32> to vector<512x256xbf16>
    %c0_6 = arith.constant 0 : index
    %c0_7 = arith.constant 0 : index
    %10 = vector.load %arg4[%c0_6, %c0_7] : memref<256x256xbf16, #tpu.memory_space<vmem>>, vector<256x256xbf16>
    %cst_8 = arith.constant dense<0.000000e+00> : vector<512x256xf32>
    %11 = tpu.matmul %9, %10, %cst_8 {dimension_numbers = #tpu.dot_dimension_numbers<[1], [0], [0], [1], [0, 0, 1, 1], [], []>} : vector<512x256xbf16>, vector<256x256xbf16>, vector<512x256xf32> -> vector<512x256xf32>
    %c0_9 = arith.constant 0 : index
    %c0_10 = arith.constant 0 : index
    %12 = vector.load %arg5[%c0_9, %c0_10] : memref<1x256xf32, #tpu.memory_space<vmem>>, vector<1x256xf32>
    %13 = vector.broadcast %12 : vector<1x256xf32> to vector<512x256xf32>
    %14 = arith.addf %11, %13 : vector<512x256xf32>
    %cst_11 = arith.constant 0.000000e+00 : f32
    %15 = vector.broadcast %cst_11 : f32 to vector<512x256xf32>
    %16 = arith.maximumf %14, %15 : vector<512x256xf32>
    %17 = arith.truncf %16 : vector<512x256xf32> to vector<512x256xbf16>
    %c0_12 = arith.constant 0 : index
    %c0_13 = arith.constant 0 : index
    %18 = vector.load %arg6[%c0_12, %c0_13] : memref<256x256xbf16, #tpu.memory_space<vmem>>, vector<256x256xbf16>
    %cst_14 = arith.constant dense<0.000000e+00> : vector<512x256xf32>
    %19 = tpu.matmul %17, %18, %cst_14 {dimension_numbers = #tpu.dot_dimension_numbers<[1], [0], [0], [1], [0, 0, 1, 1], [], []>} : vector<512x256xbf16>, vector<256x256xbf16>, vector<512x256xf32> -> vector<512x256xf32>
    %c0_15 = arith.constant 0 : index
    %c0_16 = arith.constant 0 : index
    %20 = vector.load %arg7[%c0_15, %c0_16] : memref<1x256xf32, #tpu.memory_space<vmem>>, vector<1x256xf32>
    %21 = vector.broadcast %20 : vector<1x256xf32> to vector<512x256xf32>
    %22 = arith.addf %19, %21 : vector<512x256xf32>
    %c0_17 = arith.constant 0 : index
    %c0_18 = arith.constant 0 : index
    %23 = vector.load %arg8[%c0_17, %c0_18] : memref<512x256xf32, #tpu.memory_space<vmem>>, vector<512x256xf32>
    tpu.vector_store %arg8[%c0_17, %c0_18], %22 {strides = array<i32>} : memref<512x256xf32, #tpu.memory_space<vmem>>, vector<512x256xf32>,
    return
  }
  func.func @transform_0(%arg0: i32) -> (i32, i32) {
    %c0_i32 = arith.constant 0 : i32
    %c0_i32_0 = arith.constant 0 : i32
    return %arg0, %c0_i32 : i32, i32
  }
  func.func @transform_1(%arg0: i32) -> (i32, i32) {
    %c0_i32 = arith.constant 0 : i32
    %c0_i32_0 = arith.constant 0 : i32
    %c0_i32_1 = arith.constant 0 : i32
    return %c0_i32, %c0_i32_0 : i32, i32
  }
  func.func @transform_2(%arg0: i32) -> (i32, i32) {
    %c0_i32 = arith.constant 0 : i32
    %c0_i32_0 = arith.constant 0 : i32
    %c0_i32_1 = arith.constant 0 : i32
    return %c0_i32, %c0_i32_0 : i32, i32
  }
  func.func @transform_3(%arg0: i32) -> (i32, i32) {
    %c0_i32 = arith.constant 0 : i32
    %c0_i32_0 = arith.constant 0 : i32
    %c0_i32_1 = arith.constant 0 : i32
    return %c0_i32, %c0_i32_0 : i32, i32
  }
  func.func @transform_4(%arg0: i32) -> (i32, i32) {
    %c0_i32 = arith.constant 0 : i32
    %c0_i32_0 = arith.constant 0 : i32
    %c0_i32_1 = arith.constant 0 : i32
    return %c0_i32, %c0_i32_0 : i32, i32
  }
  func.func @transform_5(%arg0: i32) -> (i32, i32) {
    %c0_i32 = arith.constant 0 : i32
    %c0_i32_0 = arith.constant 0 : i32
    %c0_i32_1 = arith.constant 0 : i32
    return %c0_i32, %c0_i32_0 : i32, i32
  }
  func.func @transform_6(%arg0: i32) -> (i32, i32) {
    %c0_i32 = arith.constant 0 : i32
    %c0_i32_0 = arith.constant 0 : i32
    %c0_i32_1 = arith.constant 0 : i32
    return %c0_i32, %c0_i32_0 : i32, i32
  }
  func.func @transform_7(%arg0: i32) -> (i32, i32) {
    %c0_i32 = arith.constant 0 : i32
    %c0_i32_0 = arith.constant 0 : i32
    return %arg0, %c0_i32 : i32, i32
  }
}

</mosaic_0001>

<llo_original>
// kernel: mlp3_forward.1
$region0: #{mlp3_forward.1}
  #allocation0 [shape = 'u32[]', space=smem, size = 0x4, offset = 0x4, fixed_abs, tag = 'smem constant byte address 0x4 - core index']
  #allocation1 [shape = 'u32[144,128]{1,0:T(1,128)}', space=vmem, size = 0x12000, scoped, tag = 'internal scratch']
  %s0 = inlined_call_operand.hbm [shape: f32[1024,256], index: 0, kind: input, shape index: {}]
  %s1 = inlined_call_operand.hbm [shape: bf16[256,256], index: 1, kind: input, shape index: {}]
  %s2 = inlined_call_operand.vmem [shape: f32[1,256], index: 2, kind: input, shape index: {}]
  %s3 = inlined_call_operand.hbm [shape: bf16[256,256], index: 3, kind: input, shape index: {}]
  %s4 = inlined_call_operand.vmem [shape: f32[1,256], index: 4, kind: input, shape index: {}]
  %s5 = inlined_call_operand.hbm [shape: bf16[256,256], index: 5, kind: input, shape index: {}]
  %s6 = inlined_call_operand.vmem [shape: f32[1,256], index: 6, kind: input, shape index: {}]
  %s7 = inlined_call_operand.hbm [shape: f32[1024,256], index: 7, kind: output, shape index: {}]
  %s8 = sld [smem:[#allocation0]]
  $region77: #{mlp3_forward.1} parent=0
    _
  %s10 = ssub.s32 1, %s8
  %s11 = scalar_select 0, %s10, %s8
  $region1: #{mlp3_forward.1} parent=0
    #allocation2 [shape = 'u8[1048576]{0}', space=vmem, size = 0x100000, scoped, tag = 'input window, operand 0']
    #allocation3 [shape = 's32[2]{0}', space=sflag, size = 0x8, scoped, tag = 'scoped memory for mlp3_forward.1']
    #allocation4 [shape = 's32[2]{0}', space=sflag, size = 0x8, scoped, tag = 'scoped memory for mlp3_forward.1']
    #allocation5 [shape = 'u8[131072]{0}', space=vmem, size = 0x20000, scoped, tag = 'input window, operand 1, single buffered']
    #allocation6 [shape = 's32[1]{0}', space=sflag, size = 0x4, scoped, tag = 'scoped memory for mlp3_forward.1']
    #allocation7 [shape = 'u8[131072]{0}', space=vmem, size = 0x20000, scoped, tag = 'input window, operand 3, single buffered']
    #allocation8 [shape = 'u8[131072]{0}', space=vmem, size = 0x20000, scoped, tag = 'input window, operand 5, single buffered']
    #allocation9 [shape = 's32[1]{0}', space=sflag, size = 0x4, scoped, tag = 'scoped memory for mlp3_forward.1']
    #allocation10 [shape = 'u8[1048576]{0}', space=vmem, size = 0x100000, scoped, tag = 'output window, operand 0']
    %12 = vsyncpa [#allocation3], 0
    %s13 = scalar_lea.sflag [#allocation3], 1
    %14 = vsyncpa %s13, 0
    %15 = vsyncpa [#allocation6], 0
    %16 = vsyncpa [#allocation9], 0
    %17 = vsyncpa [#allocation4], 0
    %s18 = scalar_lea.sflag [#allocation4], 1
    %19 = vsyncpa %s18, 0
    loop: start=0, step=1, limit=4
    $region2: #{mlp3_forward.1} parent=1 // loop_pre_header
      _
    $region3: #{mlp3_forward.1} parent=1 // loop_header
      %s21 = sphi 0, %s25
      %p22 = scmp.ge.s32.totalorder %s21, 4
      %s31 = sphi 0, %s33
      %s34 = sphi 0, %s31
      %s35 = sphi 0, %s34
      %s51 = sphi 0, %s35
      %s55 = sphi 0, %s55
      %s57 = sphi 0, %s55
      %s58 = sphi 0, %s57
      %s72 = sphi 0, %s58
      %s76 = sphi 0, %s76
      %s78 = sphi 0, %s76
      %s79 = sphi 0, %s78
      %s93 = sphi 0, %s79
      %s97 = sphi 0, %s97
      %s99 = sphi 0, %s97
      %s100 = sphi 0, %s99
      %s114 = sphi 0, %s100
      %s118 = sphi 0, %s118
      %s120 = sphi 0, %s118
      %s121 = sphi 0, %s120
      %s135 = sphi 0, %s121
      %s139 = sphi 0, %s139
      %s141 = sphi 0, %s139
      %s142 = sphi 0, %s141
      %s156 = sphi 0, %s142
      %s160 = sphi 0, %s160
      %s162 = sphi 0, %s160
      %s163 = sphi 0, %s162
      %s177 = sphi 0, %s163
      %s183 = sphi 0, %s185
      %s186 = sphi 0, %s183
      %s187 = sphi 0, %s186
      %s203 = sphi 0, %s187
    $region4: #{mlp3_forward.1} parent=1 // loop_header_branch
      %24 = sbr.rel (%p22) target = $region8
    $region5: #{mlp3_forward.1} parent=1 // loop_body
      %s26 = ssub.s32 %s21, 1
      %s27 = ssub.s32 %s21, 2
      %s28 = sadd.s32 %s21, 1
      %s29 = ssub.s32 %s21, %s28
      %p30 = scmp.eq.s32.totalorder %s29, 0
      %s32 = sadd.s32 %s31, 1
      %s33 = scalar_select %p30, %s31, %s32
      %p36 = pneg %p30
      %p37 = scmp.eq.s32.totalorder %s21, 1
      %p38 = por %p36, %p37
      %p39 = scmp.ne.s32.totalorder %s31, %s34
      %p40 = scmp.eq.s32.totalorder %s21, 0
      %p41 = por %p39, %p40
      %p42 = scmp.ne.s32.totalorder %s31, %s34
      %p43 = scmp.eq.s32.totalorder %s26, 1
      %p44 = por %p42, %p43
      %p45 = scmp.ne.s32.totalorder %s34, %s35
      %p46 = scmp.eq.s32.totalorder %s26, 0
      %p47 = por %p45, %p46
      %p48 = scmp.ne.s32.totalorder %s34, %s35
      %p49 = scmp.eq.s32.totalorder %s27, 1
      %p50 = por %p48, %p49
      %p52 = scmp.ne.s32.totalorder %s35, %s51
      %p53 = scmp.eq.s32.totalorder %s27, 0
      %p54 = por %p52, %p53
      %s56 = sadd.s32 %s55, 1
      %p59 = scmp.eq.s32.totalorder %s21, 1
      %p60 = scmp.ne.s32.totalorder %s55, %s57
      %p61 = scmp.eq.s32.totalorder %s21, 0
      %p62 = por %p60, %p61
      %p63 = scmp.ne.s32.totalorder %s55, %s57
      %p64 = scmp.eq.s32.totalorder %s26, 1
      %p65 = por %p63, %p64
      %p66 = scmp.ne.s32.totalorder %s57, %s58
      %p67 = scmp.eq.s32.totalorder %s26, 0
      %p68 = por %p66, %p67
      %p69 = scmp.ne.s32.totalorder %s57, %s58
      %p70 = scmp.eq.s32.totalorder %s27, 1
      %p71 = por %p69, %p70
      %p73 = scmp.ne.s32.totalorder %s58, %s72
      %p74 = scmp.eq.s32.totalorder %s27, 0
      %p75 = por %p73, %p74
      %s77 = sadd.s32 %s76, 1
      %p80 = scmp.eq.s32.totalorder %s21, 1
      %p81 = scmp.ne.s32.totalorder %s76, %s78
      %p82 = scmp.eq.s32.totalorder %s21, 0
      %p83 = por %p81, %p82
      %p84 = scmp.ne.s32.totalorder %s76, %s78
      %p85 = scmp.eq.s32.totalorder %s26, 1
      %p86 = por %p84, %p85
      %p87 = scmp.ne.s32.totalorder %s78, %s79
      %p88 = scmp.eq.s32.totalorder %s26, 0
      %p89 = por %p87, %p88
      %p90 = scmp.ne.s32.totalorder %s78, %s79
      %p91 = scmp.eq.s32.totalorder %s27, 1
      %p92 = por %p90, %p91
      %p94 = scmp.ne.s32.totalorder %s79, %s93
      %p95 = scmp.eq.s32.totalorder %s27, 0
      %p96 = por %p94, %p95
      %s98 = sadd.s32 %s97, 1
      %p101 = scmp.eq.s32.totalorder %s21, 1
      %p102 = scmp.ne.s32.totalorder %s97, %s99
      %p103 = scmp.eq.s32.totalorder %s21, 0
      %p104 = por %p102, %p103
      %p105 = scmp.ne.s32.totalorder %s97, %s99
      %p106 = scmp.eq.s32.totalorder %s26, 1
      %p107 = por %p105, %p106
      %p108 = scmp.ne.s32.totalorder %s99, %s100
      %p109 = scmp.eq.s32.totalorder %s26, 0
      %p110 = por %p108, %p109
      %p111 = scmp.ne.s32.totalorder %s99, %s100
      %p112 = scmp.eq.s32.totalorder %s27, 1
      %p113 = por %p111, %p112
      %p115 = scmp.ne.s32.totalorder %s100, %s114
      %p116 = scmp.eq.s32.totalorder %s27, 0
      %p117 = por %p115, %p116
      %s119 = sadd.s32 %s118, 1
      %p122 = scmp.eq.s32.totalorder %s21, 1
      %p123 = scmp.ne.s32.totalorder %s118, %s120
      %p124 = scmp.eq.s32.totalorder %s21, 0
      %p125 = por %p123, %p124
      %p126 = scmp.ne.s32.totalorder %s118, %s120
      %p127 = scmp.eq.s32.totalorder %s26, 1
      %p128 = por %p126, %p127
      %p129 = scmp.ne.s32.totalorder %s120, %s121
      %p130 = scmp.eq.s32.totalorder %s26, 0
      %p131 = por %p129, %p130
      %p132 = scmp.ne.s32.totalorder %s120, %s121
      %p133 = scmp.eq.s32.totalorder %s27, 1
      %p134 = por %p132, %p133
      %p136 = scmp.ne.s32.totalorder %s121, %s135
      %p137 = scmp.eq.s32.totalorder %s27, 0
      %p138 = por %p136, %p137
      %s140 = sadd.s32 %s139, 1
      %p143 = scmp.eq.s32.totalorder %s21, 1
      %p144 = scmp.ne.s32.totalorder %s139, %s141
      %p145 = scmp.eq.s32.totalorder %s21, 0
      %p146 = por %p144, %p145
      %p147 = scmp.ne.s32.totalorder %s139, %s141
      %p148 = scmp.eq.s32.totalorder %s26, 1
      %p149 = por %p147, %p148
      %p150 = scmp.ne.s32.totalorder %s141, %s142
      %p151 = scmp.eq.s32.totalorder %s26, 0
      %p152 = por %p150, %p151
      %p153 = scmp.ne.s32.totalorder %s141, %s142
      %p154 = scmp.eq.s32.totalorder %s27, 1
      %p155 = por %p153, %p154
      %p157 = scmp.ne.s32.totalorder %s142, %s156
      %p158 = scmp.eq.s32.totalorder %s27, 0
      %p159 = por %p157, %p158
      %s161 = sadd.s32 %s160, 1
      %p164 = scmp.eq.s32.totalorder %s21, 1
      %p165 = scmp.ne.s32.totalorder %s160, %s162
      %p166 = scmp.eq.s32.totalorder %s21, 0
      %p167 = por %p165, %p166
      %p168 = scmp.ne.s32.totalorder %s160, %s162
      %p169 = scmp.eq.s32.totalorder %s26, 1
      %p170 = por %p168, %p169
      %p171 = scmp.ne.s32.totalorder %s162, %s163
      %p172 = scmp.eq.s32.totalorder %s26, 0
      %p173 = por %p171, %p172
      %p174 = scmp.ne.s32.totalorder %s162, %s163
      %p175 = scmp.eq.s32.totalorder %s27, 1
      %p176 = por %p174, %p175
      %p178 = scmp.ne.s32.totalorder %s163, %s177
      %p179 = scmp.eq.s32.totalorder %s27, 0
      %p180 = por %p178, %p179
      %s181 = ssub.s32 %s21, %s28
      %p182 = scmp.eq.s32.totalorder %s181, 0
      %s184 = sadd.s32 %s183, 1
      %s185 = scalar_select %p182, %s183, %s184
      %p188 = pneg %p182
      %p189 = scmp.eq.s32.totalorder %s21, 1
      %p190 = por %p188, %p189
      %p191 = scmp.ne.s32.totalorder %s183, %s186
      %p192 = scmp.eq.s32.totalorder %s21, 0
      %p193 = por %p191, %p192
      %p194 = scmp.ne.s32.totalorder %s183, %s186
      %p195 = scmp.eq.s32.totalorder %s26, 1
      %p196 = por %p194, %p195
      %p197 = scmp.ne.s32.totalorder %s186, %s187
      %p198 = scmp.eq.s32.totalorder %s26, 0
      %p199 = por %p197, %p198
      %p200 = scmp.ne.s32.totalorder %s186, %s187
      %p201 = scmp.eq.s32.totalorder %s27, 1
      %p202 = por %p200, %p201
      %p204 = scmp.ne.s32.totalorder %s187, %s203
      %p205 = scmp.eq.s32.totalorder %s27, 0
      %p206 = por %p204, %p205
      %p207 = scmp.le.s32.totalorder 1, %s21
      %p208 = scmp.lt.s32.totalorder %s21, 3
      %p209 = pnand %p207, %p208
      %p210 = pneg %p209
      // Predicated region
      $region9: #{mlp3_forward.1} parent=5 // pred_check
        _
      $region10: #{mlp3_forward.1} parent=5 // pred_check_branch
        %212 = sbr.rel (%p209) target = $region12
      $region11: #{mlp3_forward.1} parent=5 // pred_region
        %s213 = ssub.s32 %s21, 1
        // Predicated region
        $region13: #{mlp3_forward.1} parent=11 // pred_check
          %p214 = pneg %p68
        $region14: #{mlp3_forward.1} parent=11 // pred_check_branch
          %216 = sbr.rel (%p214) target = $region16
        $region15: #{mlp3_forward.1} parent=11 // pred_region
          %s218 = ssub.s32 4096, 4096
          %219 = vsyncadd [#allocation6], %s218
          %s220 = sshll.u32 [#allocation5], 4
          %s221 = int_to_ptr.vmem [resolvable:$true] %s220
          %226 = dma.hbm_to_vmem [thread:$0]  %s1, 4096, %s221, [#allocation6], 128, 128, 8
        $region16: #{mlp3_forward.1} parent=11 // pred_fallthru
          _
        // Predicated region
        $region17: #{mlp3_forward.1} parent=11 // pred_check
          %p227 = pneg %p89
        $region18: #{mlp3_forward.1} parent=11 // pred_check_branch
          %229 = sbr.rel (%p227) target = $region20
        $region19: #{mlp3_forward.1} parent=11 // pred_region
          _
        $region20: #{mlp3_forward.1} parent=11 // pred_fallthru
          _
        // Predicated region
        $region21: #{mlp3_forward.1} parent=11 // pred_check
          %p230 = pneg %p110
        $region22: #{mlp3_forward.1} parent=11 // pred_check_branch
          %232 = sbr.rel (%p230) target = $region24
        $region23: #{mlp3_forward.1} parent=11 // pred_region
          %s234 = ssub.s32 4096, 4096
          %235 = vsyncadd [#allocation6], %s234
          %s236 = sshll.u32 [#allocation7], 4
          %s237 = int_to_ptr.vmem [resolvable:$true] %s236
          %242 = dma.hbm_to_vmem [thread:$0]  %s3, 4096, %s237, [#allocation6], 128, 128, 8
        $region24: #{mlp3_forward.1} parent=11 // pred_fallthru
          _
        // Predicated region
        $region25: #{mlp3_forward.1} parent=11 // pred_check
          %p243 = pneg %p131
        $region26: #{mlp3_forward.1} parent=11 // pred_check_branch
          %245 = sbr.rel (%p243) target = $region28
        $region27: #{mlp3_forward.1} parent=11 // pred_region
          _
        $region28: #{mlp3_forward.1} parent=11 // pred_fallthru
          _
        // Predicated region
        $region29: #{mlp3_forward.1} parent=11 // pred_check
          %p246 = pneg %p152
        $region30: #{mlp3_forward.1} parent=11 // pred_check_branch
          %248 = sbr.rel (%p246) target = $region32
        $region31: #{mlp3_forward.1} parent=11 // pred_region
          %s250 = ssub.s32 4096, 4096
          %251 = vsyncadd [#allocation9], %s250
          %s252 = sshll.u32 [#allocation8], 4
          %s253 = int_to_ptr.vmem [resolvable:$true] %s252
          %258 = dma.hbm_to_vmem [thread:$0]  %s5, 4096, %s253, [#allocation9], 128, 128, 8
        $region32: #{mlp3_forward.1} parent=11 // pred_fallthru
          _
        // Predicated region
        $region33: #{mlp3_forward.1} parent=11 // pred_check
          %p259 = pneg %p173
        $region34: #{mlp3_forward.1} parent=11 // pred_check_branch
          %261 = sbr.rel (%p259) target = $region36
        $region35: #{mlp3_forward.1} parent=11 // pred_region
          _
        $region36: #{mlp3_forward.1} parent=11 // pred_fallthru
          _
      $region12: #{mlp3_forward.1} parent=5 // pred_fallthru
        _
      %p262 = scmp.lt.s32.totalorder %s21, 2
      // Predicated region
      $region37: #{mlp3_forward.1} parent=5 // pred_check
        %p263 = pneg %p262
      $region38: #{mlp3_forward.1} parent=5 // pred_check_branch
        %265 = sbr.rel (%p263) target = $region40
      $region39: #{mlp3_forward.1} parent=5 // pred_region
        // Predicated region
        $region41: #{mlp3_forward.1} parent=39 // pred_check
          %p266 = pneg %p41
        $region42: #{mlp3_forward.1} parent=39 // pred_check_branch
          %268 = sbr.rel (%p266) target = $region44
        $region43: #{mlp3_forward.1} parent=39 // pred_region
          %s269 = sand.u32 %s31, 1
          %s270 = scalar_lea.sflag [#allocation3], %s269
          %s271 = sand.u32 %s31, 1
          %s272 = smul.addr %s271, 1024
          %s273 = scalar_lea.vmem [#allocation2], %s272
          %s274 = smul.u32 64, %s21
          %s276 = ssub.s32 16384, 16384
          %277 = vsyncadd %s270, %s276
          %s278 = smul.addr %s274, 2
          %s279 = smul.addr %s278, 128
          %s280 = scalar_lea.hbm %s0, %s279
          %s281 = sshll.u32 %s273, 4
          %s282 = int_to_ptr.vmem [resolvable:$true] %s281
          %287 = dma.hbm_to_vmem [thread:$0]  %s280, 16384, %s282, %s270, 256, 256, 16
        $region44: #{mlp3_forward.1} parent=39 // pred_fallthru
          _
      $region40: #{mlp3_forward.1} parent=5 // pred_fallthru
        _
      %p288 = scmp.le.s32.totalorder 1, %s21
      %p289 = scmp.lt.s32.totalorder %s21, 3
      %p290 = pnand %p288, %p289
      %p291 = pneg %p290
      // Predicated region
      $region45: #{mlp3_forward.1} parent=5 // pred_check
        _
      $region46: #{mlp3_forward.1} parent=5 // pred_check_branch
        %293 = sbr.rel (%p290) target = $region48
      $region47: #{mlp3_forward.1} parent=5 // pred_region
        %s294 = ssub.s32 %s21, 1
        %s295 = sand.u32 %s34, 1
        %s296 = scalar_lea.sflag [#allocation3], %s295
        %s297 = sand.u32 %s34, 1
        %s298 = smul.addr %s297, 1024
        %s299 = scalar_lea.vmem [#allocation2], %s298
        // Predicated region
        $region49: #{mlp3_forward.1} parent=47 // pred_check
          %p300 = pneg %p47
        $region50: #{mlp3_forward.1} parent=47 // pred_check_branch
          %302 = sbr.rel (%p300) target = $region52
        $region51: #{mlp3_forward.1} parent=47 // pred_region
          %303 = dma.done %s296, 16384
        $region52: #{mlp3_forward.1} parent=47 // pred_fallthru
          _
        // Predicated region
        $region53: #{mlp3_forward.1} parent=47 // pred_check
          %p304 = pneg %p68
        $region54: #{mlp3_forward.1} parent=47 // pred_check_branch
          %306 = sbr.rel (%p304) target = $region56
        $region55: #{mlp3_forward.1} parent=47 // pred_region
          %307 = dma.done [#allocation6], 4096
        $region56: #{mlp3_forward.1} parent=47 // pred_fallthru
          _
        // Predicated region
        $region57: #{mlp3_forward.1} parent=47 // pred_check
          %p308 = pneg %p110
        $region58: #{mlp3_forward.1} parent=47 // pred_check_branch
          %310 = sbr.rel (%p308) target = $region60
        $region59: #{mlp3_forward.1} parent=47 // pred_region
          %311 = dma.done [#allocation6], 4096
        $region60: #{mlp3_forward.1} parent=47 // pred_fallthru
          _
        // Predicated region
        $region61: #{mlp3_forward.1} parent=47 // pred_check
          %p312 = pneg %p152
        $region62: #{mlp3_forward.1} parent=47 // pred_check_branch
          %314 = sbr.rel (%p312) target = $region64
        $region63: #{mlp3_forward.1} parent=47 // pred_region
          %315 = dma.done [#allocation9], 4096
        $region64: #{mlp3_forward.1} parent=47 // pred_fallthru
          _
        %s316 = sand.u32 %s34, 1
        %s317 = scalar_lea.sflag [#allocation3], %s316
        %s318 = sand.u32 %s34, 1
        %s319 = smul.addr %s318, 1024
        %s320 = scalar_lea.vmem [#allocation2], %s319
        %p321 = pneg %p47
        %p322 = pneg %p44
        %p323 = pneg %p68
        %p324 = pneg %p65
        %p325 = pneg %p89
        %p326 = pneg %p86
        %p327 = pneg %p110
        %p328 = pneg %p107
        %p329 = pneg %p131
        %p330 = pneg %p128
        %p331 = pneg %p152
        %p332 = pneg %p149
        %p333 = pneg %p173
        %p334 = pneg %p170
        %p335 = pneg %p199
        %p336 = pneg %p196
        %s337 = sand.u32 %s186, 1
        %s338 = scalar_lea.sflag [#allocation4], %s337
        %s339 = sand.u32 %s186, 1
        %s340 = smul.addr %s339, 1024
        %s341 = scalar_lea.vmem [#allocation10], %s340
        %s342 = smul.u32 64, %s26
        %s343 = smul.u32 64, %s26
        %v344 = vld [vmem:[%s299] sm:$0xff]
        %v345 = vld [vmem:[%s299 + $0x8] sm:$0xff]
        %v346 = vld [vmem:[%s299 + $0x10] sm:$0xff]
        %v347 = vld [vmem:[%s299 + $0x18] sm:$0xff]
        %v348 = vld [vmem:[%s299 + $0x20] sm:$0xff]
        %v349 = vld [vmem:[%s299 + $0x28] sm:$0xff]
        %v350 = vld [vmem:[%s299 + $0x30] sm:$0xff]
        %v351 = vld [vmem:[%s299 + $0x38] sm:$0xff]
        %v352 = vld [vmem:[%s299 + $0x40] sm:$0xff]
        %v353 = vld [vmem:[%s299 + $0x48] sm:$0xff]
        %v354 = vld [vmem:[%s299 + $0x50] sm:$0xff]
        %v355 = vld [vmem:[%s299 + $0x58] sm:$0xff]
        %v356 = vld [vmem:[%s299 + $0x60] sm:$0xff]
        %v357 = vld [vmem:[%s299 + $0x68] sm:$0xff]
        %v358 = vld [vmem:[%s299 + $0x70] sm:$0xff]
        %v359 = vld [vmem:[%s299 + $0x78] sm:$0xff]
        %v360 = vld [vmem:[%s299 + $0x80] sm:$0xff]
        %v361 = vld [vmem:[%s299 + $0x88] sm:$0xff]
        %v362 = vld [vmem:[%s299 + $0x90] sm:$0xff]
        %v363 = vld [vmem:[%s299 + $0x98] sm:$0xff]
        %v364 = vld [vmem:[%s299 + $0xa0] sm:$0xff]
        %v365 = vld [vmem:[%s299 + $0xa8] sm:$0xff]
        %v366 = vld [vmem:[%s299 + $0xb0] sm:$0xff]
        %v367 = vld [vmem:[%s299 + $0xb8] sm:$0xff]
        %v368 = vld [vmem:[%s299 + $0xc0] sm:$0xff]
        %v369 = vld [vmem:[%s299 + $0xc8] sm:$0xff]
        %v370 = vld [vmem:[%s299 + $0xd0] sm:$0xff]
        %v371 = vld [vmem:[%s299 + $0xd8] sm:$0xff]
        %v372 = vld [vmem:[%s299 + $0xe0] sm:$0xff]
        %v373 = vld [vmem:[%s299 + $0xe8] sm:$0xff]
        %v374 = vld [vmem:[%s299 + $0xf0] sm:$0xff]
        %v375 = vld [vmem:[%s299 + $0xf8] sm:$0xff]
        %v376 = vld [vmem:[%s299 + $0x100] sm:$0xff]
        %v377 = vld [vmem:[%s299 + $0x108] sm:$0xff]
        %v378 = vld [vmem:[%s299 + $0x110] sm:$0xff]
        %v379 = vld [vmem:[%s299 + $0x118] sm:$0xff]
        %v380 = vld [vmem:[%s299 + $0x120] sm:$0xff]
        %v381 = vld [vmem:[%s299 + $0x128] sm:$0xff]
        %v382 = vld [vmem:[%s299 + $0x130] sm:$0xff]
        %v383 = vld [vmem:[%s299 + $0x138] sm:$0xff]
        %v384 = vld [vmem:[%s299 + $0x140] sm:$0xff]
        %v385 = vld [vmem:[%s299 + $0x148] sm:$0xff]
        %v386 = vld [vmem:[%s299 + $0x150] sm:$0xff]
        %v387 = vld [vmem:[%s299 + $0x158] sm:$0xff]
        %v388 = vld [vmem:[%s299 + $0x160] sm:$0xff]
        %v389 = vld [vmem:[%s299 + $0x168] sm:$0xff]
        %v390 = vld [vmem:[%s299 + $0x170] sm:$0xff]
        %v391 = vld [vmem:[%s299 + $0x178] sm:$0xff]
        %v392 = vld [vmem:[%s299 + $0x180] sm:$0xff]
        %v393 = vld [vmem:[%s299 + $0x188] sm:$0xff]
        %v394 = vld [vmem:[%s299 + $0x190] sm:$0xff]
        %v395 = vld [vmem:[%s299 + $0x198] sm:$0xff]
        %v396 = vld [vmem:[%s299 + $0x1a0] sm:$0xff]
        %v397 = vld [vmem:[%s299 + $0x1a8] sm:$0xff]
        %v398 = vld [vmem:[%s299 + $0x1b0] sm:$0xff]
        %v399 = vld [vmem:[%s299 + $0x1b8] sm:$0xff]
        %v400 = vld [vmem:[%s299 + $0x1c0] sm:$0xff]
        %v401 = vld [vmem:[%s299 + $0x1c8] sm:$0xff]
        %v402 = vld [vmem:[%s299 + $0x1d0] sm:$0xff]
        %v403 = vld [vmem:[%s299 + $0x1d8] sm:$0xff]
        %v404 = vld [vmem:[%s299 + $0x1e0] sm:$0xff]
        %v405 = vld [vmem:[%s299 + $0x1e8] sm:$0xff]
        %v406 = vld [vmem:[%s299 + $0x1f0] sm:$0xff]
        %v407 = vld [vmem:[%s299 + $0x1f8] sm:$0xff]
        %v408 = vld [vmem:[%s299 + $0x200] sm:$0xff]
        %v409 = vld [vmem:[%s299 + $0x208] sm:$0xff]
        %v410 = vld [vmem:[%s299 + $0x210] sm:$0xff]
        %v411 = vld [vmem:[%s299 + $0x218] sm:$0xff]
        %v412 = vld [vmem:[%s299 + $0x220] sm:$0xff]
        %v413 = vld [vmem:[%s299 + $0x228] sm:$0xff]
        %v414 = vld [vmem:[%s299 + $0x230] sm:$0xff]
        %v415 = vld [vmem:[%s299 + $0x238] sm:$0xff]
        %v416 = vld [vmem:[%s299 + $0x240] sm:$0xff]
        %v417 = vld [vmem:[%s299 + $0x248] sm:$0xff]
        %v418 = vld [vmem:[%s299 + $0x250] sm:$0xff]
        %v419 = vld [vmem:[%s299 + $0x258] sm:$0xff]
        %v420 = vld [vmem:[%s299 + $0x260] sm:$0xff]
        %v421 = vld [vmem:[%s299 + $0x268] sm:$0xff]
        %v422 = vld [vmem:[%s299 + $0x270] sm:$0xff]
        %v423 = vld [vmem:[%s299 + $0x278] sm:$0xff]
        %v424 = vld [vmem:[%s299 + $0x280] sm:$0xff]
        %v425 = vld [vmem:[%s299 + $0x288] sm:$0xff]
        %v426 = vld [vmem:[%s299 + $0x290] sm:$0xff]
        %v427 = vld [vmem:[%s299 + $0x298] sm:$0xff]
        %v428 = vld [vmem:[%s299 + $0x2a0] sm:$0xff]
        %v429 = vld [vmem:[%s299 + $0x2a8] sm:$0xff]
        %v430 = vld [vmem:[%s299 + $0x2b0] sm:$0xff]
        %v431 = vld [vmem:[%s299 + $0x2b8] sm:$0xff]
        %v432 = vld [vmem:[%s299 + $0x2c0] sm:$0xff]
        %v433 = vld [vmem:[%s299 + $0x2c8] sm:$0xff]
        %v434 = vld [vmem:[%s299 + $0x2d0] sm:$0xff]
        %v435 = vld [vmem:[%s299 + $0x2d8] sm:$0xff]
        %v436 = vld [vmem:[%s299 + $0x2e0] sm:$0xff]
        %v437 = vld [vmem:[%s299 + $0x2e8] sm:$0xff]
        %v438 = vld [vmem:[%s299 + $0x2f0] sm:$0xff]
        %v439 = vld [vmem:[%s299 + $0x2f8] sm:$0xff]
        %v440 = vld [vmem:[%s299 + $0x300] sm:$0xff]
        %v441 = vld [vmem:[%s299 + $0x308] sm:$0xff]
        %v442 = vld [vmem:[%s299 + $0x310] sm:$0xff]
        %v443 = vld [vmem:[%s299 + $0x318] sm:$0xff]
        %v444 = vld [vmem:[%s299 + $0x320] sm:$0xff]
        %v445 = vld [vmem:[%s299 + $0x328] sm:$0xff]
        %v446 = vld [vmem:[%s299 + $0x330] sm:$0xff]
        %v447 = vld [vmem:[%s299 + $0x338] sm:$0xff]
        %v448 = vld [vmem:[%s299 + $0x340] sm:$0xff]
        %v449 = vld [vmem:[%s299 + $0x348] sm:$0xff]
        %v450 = vld [vmem:[%s299 + $0x350] sm:$0xff]
        %v451 = vld [vmem:[%s299 + $0x358] sm:$0xff]
        %v452 = vld [vmem:[%s299 + $0x360] sm:$0xff]
        %v453 = vld [vmem:[%s299 + $0x368] sm:$0xff]
        %v454 = vld [vmem:[%s299 + $0x370] sm:$0xff]
        %v455 = vld [vmem:[%s299 + $0x378] sm:$0xff]
        %v456 = vld [vmem:[%s299 + $0x380] sm:$0xff]
        %v457 = vld [vmem:[%s299 + $0x388] sm:$0xff]
        %v458 = vld [vmem:[%s299 + $0x390] sm:$0xff]
        %v459 = vld [vmem:[%s299 + $0x398] sm:$0xff]
        %v460 = vld [vmem:[%s299 + $0x3a0] sm:$0xff]
        %v461 = vld [vmem:[%s299 + $0x3a8] sm:$0xff]
        %v462 = vld [vmem:[%s299 + $0x3b0] sm:$0xff]
        %v463 = vld [vmem:[%s299 + $0x3b8] sm:$0xff]
        %v464 = vld [vmem:[%s299 + $0x3c0] sm:$0xff]
        %v465 = vld [vmem:[%s299 + $0x3c8] sm:$0xff]
        %v466 = vld [vmem:[%s299 + $0x3d0] sm:$0xff]
        %v467 = vld [vmem:[%s299 + $0x3d8] sm:$0xff]
        %v468 = vld [vmem:[%s299 + $0x3e0] sm:$0xff]
        %v469 = vld [vmem:[%s299 + $0x3e8] sm:$0xff]
        %v470 = vld [vmem:[%s299 + $0x3f0] sm:$0xff]
        %v471 = vld [vmem:[%s299 + $0x3f8] sm:$0xff]
        %v472 = vpack.c.bf16 %v346, %v344
        %v473 = vpack.c.bf16 %v347, %v345
        %v474 = vpack.c.bf16 %v350, %v348
        %v475 = vpack.c.bf16 %v351, %v349
        %v476 = vpack.c.bf16 %v354, %v352
        %v477 = vpack.c.bf16 %v355, %v353
        %v478 = vpack.c.bf16 %v358, %v356
        %v479 = vpack.c.bf16 %v359, %v357
        %v480 = vpack.c.bf16 %v362, %v360
        %v481 = vpack.c.bf16 %v363, %v361
        %v482 = vpack.c.bf16 %v366, %v364
        %v483 = vpack.c.bf16 %v367, %v365
        %v484 = vpack.c.bf16 %v370, %v368
        %v485 = vpack.c.bf16 %v371, %v369
        %v486 = vpack.c.bf16 %v374, %v372
        %v487 = vpack.c.bf16 %v375, %v373
        %v488 = vpack.c.bf16 %v378, %v376
        %v489 = vpack.c.bf16 %v379, %v377
        %v490 = vpack.c.bf16 %v382, %v380
        %v491 = vpack.c.bf16 %v383, %v381
        %v492 = vpack.c.bf16 %v386, %v384
        %v493 = vpack.c.bf16 %v387, %v385
        %v494 = vpack.c.bf16 %v390, %v388
        %v495 = vpack.c.bf16 %v391, %v389
        %v496 = vpack.c.bf16 %v394, %v392
        %v497 = vpack.c.bf16 %v395, %v393
        %v498 = vpack.c.bf16 %v398, %v396
        %v499 = vpack.c.bf16 %v399, %v397
        %v500 = vpack.c.bf16 %v402, %v400
        %v501 = vpack.c.bf16 %v403, %v401
        %v502 = vpack.c.bf16 %v406, %v404
        %v503 = vpack.c.bf16 %v407, %v405
        %v504 = vpack.c.bf16 %v410, %v408
        %v505 = vpack.c.bf16 %v411, %v409
        %v506 = vpack.c.bf16 %v414, %v412
        %v507 = vpack.c.bf16 %v415, %v413
        %v508 = vpack.c.bf16 %v418, %v416
        %v509 = vpack.c.bf16 %v419, %v417
        %v510 = vpack.c.bf16 %v422, %v420
        %v511 = vpack.c.bf16 %v423, %v421
        %v512 = vpack.c.bf16 %v426, %v424
        %v513 = vpack.c.bf16 %v427, %v425
        %v514 = vpack.c.bf16 %v430, %v428
        %v515 = vpack.c.bf16 %v431, %v429
        %v516 = vpack.c.bf16 %v434, %v432
        %v517 = vpack.c.bf16 %v435, %v433
        %v518 = vpack.c.bf16 %v438, %v436
        %v519 = vpack.c.bf16 %v439, %v437
        %v520 = vpack.c.bf16 %v442, %v440
        %v521 = vpack.c.bf16 %v443, %v441
        %v522 = vpack.c.bf16 %v446, %v444
        %v523 = vpack.c.bf16 %v447, %v445
        %v524 = vpack.c.bf16 %v450, %v448
        %v525 = vpack.c.bf16 %v451, %v449
        %v526 = vpack.c.bf16 %v454, %v452
        %v527 = vpack.c.bf16 %v455, %v453
        %v528 = vpack.c.bf16 %v458, %v456
        %v529 = vpack.c.bf16 %v459, %v457
        %v530 = vpack.c.bf16 %v462, %v460
        %v531 = vpack.c.bf16 %v463, %v461
        %v532 = vpack.c.bf16 %v466, %v464
        %v533 = vpack.c.bf16 %v467, %v465
        %v534 = vpack.c.bf16 %v470, %v468
        %v535 = vpack.c.bf16 %v471, %v469
        %v536 = vld [vmem:[#allocation5] sm:$0xff]
        %v537 = vld [vmem:[#allocation5 + $0x8] sm:$0xff]
        %v538 = vld [vmem:[#allocation5 + $0x10] sm:$0xff]
        %v539 = vld [vmem:[#allocation5 + $0x18] sm:$0xff]
        %v540 = vld [vmem:[#allocation5 + $0x20] sm:$0xff]
        %v541 = vld [vmem:[#allocation5 + $0x28] sm:$0xff]
        %v542 = vld [vmem:[#allocation5 + $0x30] sm:$0xff]
        %v543 = vld [vmem:[#allocation5 + $0x38] sm:$0xff]
        %v544 = vld [vmem:[#allocation5 + $0x40] sm:$0xff]
        %v545 = vld [vmem:[#allocation5 + $0x48] sm:$0xff]
        %v546 = vld [vmem:[#allocation5 + $0x50] sm:$0xff]
        %v547 = vld [vmem:[#allocation5 + $0x58] sm:$0xff]
        %v548 = vld [vmem:[#allocation5 + $0x60] sm:$0xff]
        %v549 = vld [vmem:[#allocation5 + $0x68] sm:$0xff]
        %v550 = vld [vmem:[#allocation5 + $0x70] sm:$0xff]
        %v551 = vld [vmem:[#allocation5 + $0x78] sm:$0xff]
        %v552 = vld [vmem:[#allocation5 + $0x80] sm:$0xff]
        %v553 = vld [vmem:[#allocation5 + $0x88] sm:$0xff]
        %v554 = vld [vmem:[#allocation5 + $0x90] sm:$0xff]
        %v555 = vld [vmem:[#allocation5 + $0x98] sm:$0xff]
        %v556 = vld [vmem:[#allocation5 + $0xa0] sm:$0xff]
        %v557 = vld [vmem:[#allocation5 + $0xa8] sm:$0xff]
        %v558 = vld [vmem:[#allocation5 + $0xb0] sm:$0xff]
        %v559 = vld [vmem:[#allocation5 + $0xb8] sm:$0xff]
        %v560 = vld [vmem:[#allocation5 + $0xc0] sm:$0xff]
        %v561 = vld [vmem:[#allocation5 + $0xc8] sm:$0xff]
        %v562 = vld [vmem:[#allocation5 + $0xd0] sm:$0xff]
        %v563 = vld [vmem:[#allocation5 + $0xd8] sm:$0xff]
        %v564 = vld [vmem:[#allocation5 + $0xe0] sm:$0xff]
        %v565 = vld [vmem:[#allocation5 + $0xe8] sm:$0xff]
        %v566 = vld [vmem:[#allocation5 + $0xf0] sm:$0xff]
        %v567 = vld [vmem:[#allocation5 + $0xf8] sm:$0xff]
        %v568 = vld [vmem:[%s2] sm:$0x3]
        %v570 = vlaneseq
        %v571 = vshrl.u32 %v570, 7
        %v572 = vsub.s32 0, %v571
        %v573 = vrot.slane %v568, %v572
        %v574 = vlaneseq
        %v575 = vshrl.u32 %v574, 7
        %v576 = vsub.s32 1, %v575
        %v577 = vrot.slane %v568, %v576
        %v612 = vunpack.c.l.b16 %v536
        %v613 = vunpack.c.h.b16 %v536
        %v614 = vunpack.c.l.b16 %v537
        %v615 = vunpack.c.h.b16 %v537
        %v616 = vunpack.c.l.b16 %v538
        %v617 = vunpack.c.h.b16 %v538
        %v618 = vunpack.c.l.b16 %v539
        %v619 = vunpack.c.h.b16 %v539
        %v620 = vunpack.c.l.b16 %v540
        %v621 = vunpack.c.h.b16 %v540
        %v622 = vunpack.c.l.b16 %v541
        %v623 = vunpack.c.h.b16 %v541
        %v624 = vunpack.c.l.b16 %v542
        %v625 = vunpack.c.h.b16 %v542
        %v626 = vunpack.c.l.b16 %v543
        %v627 = vunpack.c.h.b16 %v543
        %v628 = vunpack.c.l.b16 %v544
        %v629 = vunpack.c.h.b16 %v544
        %v630 = vunpack.c.l.b16 %v545
        %v631 = vunpack.c.h.b16 %v545
        %v632 = vunpack.c.l.b16 %v546
        %v633 = vunpack.c.h.b16 %v546
        %v634 = vunpack.c.l.b16 %v547
        %v635 = vunpack.c.h.b16 %v547
        %v636 = vunpack.c.l.b16 %v548
        %v637 = vunpack.c.h.b16 %v548
        %v638 = vunpack.c.l.b16 %v549
        %v639 = vunpack.c.h.b16 %v549
        %v640 = vunpack.c.l.b16 %v550
        %v641 = vunpack.c.h.b16 %v550
        %v642 = vunpack.c.l.b16 %v551
        %v643 = vunpack.c.h.b16 %v551
        %v644 = vunpack.c.l.b16 %v552
        %v645 = vunpack.c.h.b16 %v552
        %v646 = vunpack.c.l.b16 %v553
        %v647 = vunpack.c.h.b16 %v553
        %v648 = vunpack.c.l.b16 %v554
        %v649 = vunpack.c.h.b16 %v554
        %v650 = vunpack.c.l.b16 %v555
        %v651 = vunpack.c.h.b16 %v555
        %v652 = vunpack.c.l.b16 %v556
        %v653 = vunpack.c.h.b16 %v556
        %v654 = vunpack.c.l.b16 %v557
        %v655 = vunpack.c.h.b16 %v557
        %v656 = vunpack.c.l.b16 %v558
        %v657 = vunpack.c.h.b16 %v558
        %v658 = vunpack.c.l.b16 %v559
        %v659 = vunpack.c.h.b16 %v559
        %v660 = vunpack.c.l.b16 %v560
        %v661 = vunpack.c.h.b16 %v560
        %v662 = vunpack.c.l.b16 %v561
        %v663 = vunpack.c.h.b16 %v561
        %v664 = vunpack.c.l.b16 %v562
        %v665 = vunpack.c.h.b16 %v562
        %v666 = vunpack.c.l.b16 %v563
        %v667 = vunpack.c.h.b16 %v563
        %v668 = vunpack.c.l.b16 %v564
        %v669 = vunpack.c.h.b16 %v564
        %v670 = vunpack.c.l.b16 %v565
        %v671 = vunpack.c.h.b16 %v565
        %v672 = vunpack.c.l.b16 %v566
        %v673 = vunpack.c.h.b16 %v566
        %v674 = vunpack.c.l.b16 %v567
        %v675 = vunpack.c.h.b16 %v567
        %v676 = vpack.c.b16 %v614, %v612
        %v677 = vpack.c.b16 %v615, %v613
        %v678 = vpack.c.b16 %v618, %v616
        %v679 = vpack.c.b16 %v619, %v617
        %v680 = vpack.c.b16 %v622, %v620
        %v681 = vpack.c.b16 %v623, %v621
        %v682 = vpack.c.b16 %v626, %v624
        %v683 = vpack.c.b16 %v627, %v625
        %v684 = vpack.c.b16 %v630, %v628
        %v685 = vpack.c.b16 %v631, %v629
        %v686 = vpack.c.b16 %v634, %v632
        %v687 = vpack.c.b16 %v635, %v633
        %v688 = vpack.c.b16 %v638, %v636
        %v689 = vpack.c.b16 %v639, %v637
        %v690 = vpack.c.b16 %v642, %v640
        %v691 = vpack.c.b16 %v643, %v641
        %v692 = vpack.c.b16 %v646, %v644
        %v693 = vpack.c.b16 %v647, %v645
        %v694 = vpack.c.b16 %v650, %v648
        %v695 = vpack.c.b16 %v651, %v649
        %v696 = vpack.c.b16 %v654, %v652
        %v697 = vpack.c.b16 %v655, %v653
        %v698 = vpack.c.b16 %v658, %v656
        %v699 = vpack.c.b16 %v659, %v657
        %v700 = vpack.c.b16 %v662, %v660
        %v701 = vpack.c.b16 %v663, %v661
        %v702 = vpack.c.b16 %v666, %v664
        %v703 = vpack.c.b16 %v667, %v665
        %v704 = vpack.c.b16 %v670, %v668
        %v705 = vpack.c.b16 %v671, %v669
        %v706 = vpack.c.b16 %v674, %v672
        %v707 = vpack.c.b16 %v675, %v673
        %740 = vmatprep.subr.bf16.mxu0 %v677
        %741 = vmatpush1.bf16.msra.mxu0 %v676
        %742 = vmatprep.subr.bf16.mxu0 %v679
        %743 = vmatpush1.bf16.msra.mxu0 %v678
        %744 = vmatprep.subr.bf16.mxu0 %v681
        %745 = vmatpush1.bf16.msra.mxu0 %v680
        %746 = vmatprep.subr.bf16.mxu0 %v683
        %747 = vmatpush1.bf16.msra.mxu0 %v682
        %748 = vmatprep.subr.bf16.mxu0 %v685
        %749 = vmatpush1.bf16.msra.mxu0 %v684
        %750 = vmatprep.subr.bf16.mxu0 %v687
        %751 = vmatpush1.bf16.msra.mxu0 %v686
        %752 = vmatprep.subr.bf16.mxu0 %v689
        %753 = vmatpush1.bf16.msra.mxu0 %v688
        %754 = vmatprep.subr.bf16.mxu0 %v691
        %755 = vmatpush1.bf16.msra.mxu0 %v690
        %756 = vmatprep.subr.bf16.mxu0 %v693
        %757 = vmatpush1.bf16.msra.mxu0 %v692
        %758 = vmatprep.subr.bf16.mxu0 %v695
        %759 = vmatpush1.bf16.msra.mxu0 %v694
        %760 = vmatprep.subr.bf16.mxu0 %v697
        %761 = vmatpush1.bf16.msra.mxu0 %v696
        %762 = vmatprep.subr.bf16.mxu0 %v699
        %763 = vmatpush1.bf16.msra.mxu0 %v698
        %764 = vmatprep.subr.bf16.mxu0 %v701
        %765 = vmatpush1.bf16.msra.mxu0 %v700
        %766 = vmatprep.subr.bf16.mxu0 %v703
        %767 = vmatpush1.bf16.msra.mxu0 %v702
        %768 = vmatprep.subr.bf16.mxu0 %v705
        %769 = vmatpush1.bf16.msra.mxu0 %v704
        %770 = vmatprep.subr.bf16.mxu0 %v707
        %771 = vmatpush1.bf16.msra.mxu0 %v706
        %772 = vmatprep.mubr.bf16.mxu0 %v473
        %773 = vmatmul.mubr.bf16.gmra.mrb[0].mxu0 %v472
        %v774 = vpop.f32.mrb[0].mxu0
        %v775 = vadd.f32 %v573, %v774
        %v776 = vpop.f32.mrb[0].mxu0
        %v777 = vadd.f32 %v577, %v776
        %v778 = vpop.f32.mrb[0].mxu0
        %v779 = vadd.f32 %v573, %v778
        %v780 = vpop.f32.mrb[0].mxu0
        %v781 = vadd.f32 %v577, %v780
        %782 = vmatprep.mubr.bf16.mxu0 %v475
        %783 = vmatmul.mubr.bf16.gmra.mrb[0].mxu0 %v474
        %v784 = vpop.f32.mrb[0].mxu0
        %v785 = vadd.f32 %v573, %v784
        %v786 = vpop.f32.mrb[0].mxu0
        %v787 = vadd.f32 %v577, %v786
        %v788 = vpop.f32.mrb[0].mxu0
        %v789 = vadd.f32 %v573, %v788
        %v790 = vpop.f32.mrb[0].mxu0
        %v791 = vadd.f32 %v577, %v790
        %792 = vmatprep.mubr.bf16.mxu0 %v477
        %793 = vmatmul.mubr.bf16.gmra.mrb[0].mxu0 %v476
        %v794 = vpop.f32.mrb[0].mxu0
        %v795 = vadd.f32 %v573, %v794
        %v796 = vpop.f32.mrb[0].mxu0
        %v797 = vadd.f32 %v577, %v796
        %v798 = vpop.f32.mrb[0].mxu0
        %v799 = vadd.f32 %v573, %v798
        %v800 = vpop.f32.mrb[0].mxu0
        %v801 = vadd.f32 %v577, %v800
        %802 = vmatprep.mubr.bf16.mxu0 %v479
        %803 = vmatmul.mubr.bf16.gmra.mrb[0].mxu0 %v478
        %v804 = vpop.f32.mrb[0].mxu0
        %v805 = vadd.f32 %v573, %v804
        %v806 = vpop.f32.mrb[0].mxu0
        %v807 = vadd.f32 %v577, %v806
        %v808 = vpop.f32.mrb[0].mxu0
        %v809 = vadd.f32 %v573, %v808
        %v810 = vpop.f32.mrb[0].mxu0
        %v811 = vadd.f32 %v577, %v810
        %812 = vmatprep.mubr.bf16.mxu0 %v481
        %813 = vmatmul.mubr.bf16.gmra.mrb[0].mxu0 %v480
        %v814 = vpop.f32.mrb[0].mxu0
        %v815 = vadd.f32 %v573, %v814
        %v816 = vpop.f32.mrb[0].mxu0
        %v817 = vadd.f32 %v577, %v816
        %v818 = vpop.f32.mrb[0].mxu0
        %v819 = vadd.f32 %v573, %v818
        %v820 = vpop.f32.mrb[0].mxu0
        %v821 = vadd.f32 %v577, %v820
        %822 = vmatprep.mubr.bf16.mxu0 %v483
        %823 = vmatmul.mubr.bf16.gmra.mrb[0].mxu0 %v482
        %v824 = vpop.f32.mrb[0].mxu0
        %v825 = vadd.f32 %v573, %v824
        %v826 = vpop.f32.mrb[0].mxu0
        %v827 = vadd.f32 %v577, %v826
        %v828 = vpop.f32.mrb[0].mxu0
        %v829 = vadd.f32 %v573, %v828
        %v830 = vpop.f32.mrb[0].mxu0
        %v831 = vadd.f32 %v577, %v830
        %832 = vmatprep.mubr.bf16.mxu0 %v485
        %833 = vmatmul.mubr.bf16.gmra.mrb[0].mxu0 %v484
        %v834 = vpop.f32.mrb[0].mxu0
        %v835 = vadd.f32 %v573, %v834
        %v836 = vpop.f32.mrb[0].mxu0
        %v837 = vadd.f32 %v577, %v836
        %v838 = vpop.f32.mrb[0].mxu0
        %v839 = vadd.f32 %v573, %v838
        %v840 = vpop.f32.mrb[0].mxu0
        %v841 = vadd.f32 %v577, %v840
        %842 = vmatprep.mubr.bf16.mxu0 %v487
        %843 = vmatmul.mubr.bf16.gmra.mrb[0].mxu0 %v486
        %v844 = vpop.f32.mrb[0].mxu0
        %v845 = vadd.f32 %v573, %v844
        %v846 = vpop.f32.mrb[0].mxu0
        %v847 = vadd.f32 %v577, %v846
        %v848 = vpop.f32.mrb[0].mxu0
        %v849 = vadd.f32 %v573, %v848
        %v850 = vpop.f32.mrb[0].mxu0
        %v851 = vadd.f32 %v577, %v850
        %852 = vmatprep.mubr.bf16.mxu0 %v489
        %853 = vmatmul.mubr.bf16.gmra.mrb[0].mxu0 %v488
        %v854 = vpop.f32.mrb[0].mxu0
        %v855 = vadd.f32 %v573, %v854
        %v856 = vpop.f32.mrb[0].mxu0
        %v857 = vadd.f32 %v577, %v856
        %v858 = vpop.f32.mrb[0].mxu0
        %v859 = vadd.f32 %v573, %v858
        %v860 = vpop.f32.mrb[0].mxu0
        %v861 = vadd.f32 %v577, %v860
        %862 = vmatprep.mubr.bf16.mxu0 %v491
        %863 = vmatmul.mubr.bf16.gmra.mrb[0].mxu0 %v490
        %v864 = vpop.f32.mrb[0].mxu0
        %v865 = vadd.f32 %v573, %v864
        %v866 = vpop.f32.mrb[0].mxu0
        %v867 = vadd.f32 %v577, %v866
        %v868 = vpop.f32.mrb[0].mxu0
        %v869 = vadd.f32 %v573, %v868
        %v870 = vpop.f32.mrb[0].mxu0
        %v871 = vadd.f32 %v577, %v870
        %872 = vmatprep.mubr.bf16.mxu0 %v493
        %873 = vmatmul.mubr.bf16.gmra.mrb[0].mxu0 %v492
        %v874 = vpop.f32.mrb[0].mxu0
        %v875 = vadd.f32 %v573, %v874
        %v876 = vpop.f32.mrb[0].mxu0
        %v877 = vadd.f32 %v577, %v876
        %v878 = vpop.f32.mrb[0].mxu0
        %v879 = vadd.f32 %v573, %v878
        %v880 = vpop.f32.mrb[0].mxu0
        %v881 = vadd.f32 %v577, %v880
        %882 = vmatprep.mubr.bf16.mxu0 %v495
        %883 = vmatmul.mubr.bf16.gmra.mrb[0].mxu0 %v494
        %v884 = vpop.f32.mrb[0].mxu0
        %v885 = vadd.f32 %v573, %v884
        %v886 = vpop.f32.mrb[0].mxu0
        %v887 = vadd.f32 %v577, %v886
        %v888 = vpop.f32.mrb[0].mxu0
        %v889 = vadd.f32 %v573, %v888
        %v890 = vpop.f32.mrb[0].mxu0
        %v891 = vadd.f32 %v577, %v890
        %892 = vmatprep.mubr.bf16.mxu0 %v497
        %893 = vmatmul.mubr.bf16.gmra.mrb[0].mxu0 %v496
        %v894 = vpop.f32.mrb[0].mxu0
        %v895 = vadd.f32 %v573, %v894
        %v896 = vpop.f32.mrb[0].mxu0
        %v897 = vadd.f32 %v577, %v896
        %v898 = vpop.f32.mrb[0].mxu0
        %v899 = vadd.f32 %v573, %v898
        %v900 = vpop.f32.mrb[0].mxu0
        %v901 = vadd.f32 %v577, %v900
        %902 = vmatprep.mubr.bf16.mxu0 %v499
        %903 = vmatmul.mubr.bf16.gmra.mrb[0].mxu0 %v498
        %v904 = vpop.f32.mrb[0].mxu0
        %v905 = vadd.f32 %v573, %v904
        %v906 = vpop.f32.mrb[0].mxu0
        %v907 = vadd.f32 %v577, %v906
        %v908 = vpop.f32.mrb[0].mxu0
        %v909 = vadd.f32 %v573, %v908
        %v910 = vpop.f32.mrb[0].mxu0
        %v911 = vadd.f32 %v577, %v910
        %912 = vmatprep.mubr.bf16.mxu0 %v501
        %913 = vmatmul.mubr.bf16.gmra.mrb[0].mxu0 %v500
        %v914 = vpop.f32.mrb[0].mxu0
        %v915 = vadd.f32 %v573, %v914
        %v916 = vpop.f32.mrb[0].mxu0
        %v917 = vadd.f32 %v577, %v916
        %v918 = vpop.f32.mrb[0].mxu0
        %v919 = vadd.f32 %v573, %v918
        %v920 = vpop.f32.mrb[0].mxu0
        %v921 = vadd.f32 %v577, %v920
        %922 = vmatprep.mubr.bf16.mxu0 %v503
        %923 = vmatmul.mubr.bf16.gmra.mrb[0].mxu0 %v502
        %v924 = vpop.f32.mrb[0].mxu0
        %v925 = vadd.f32 %v573, %v924
        %v926 = vpop.f32.mrb[0].mxu0
        %v927 = vadd.f32 %v577, %v926
        %v928 = vpop.f32.mrb[0].mxu0
        %v929 = vadd.f32 %v573, %v928
        %v930 = vpop.f32.mrb[0].mxu0
        %v931 = vadd.f32 %v577, %v930
        %932 = vmatprep.mubr.bf16.mxu0 %v505
        %933 = vmatmul.mubr.bf16.gmra.mrb[0].mxu0 %v504
        %v934 = vpop.f32.mrb[0].mxu0
        %v935 = vadd.f32 %v573, %v934
        %v936 = vpop.f32.mrb[0].mxu0
        %v937 = vadd.f32 %v577, %v936
        %v938 = vpop.f32.mrb[0].mxu0
        %v939 = vadd.f32 %v573, %v938
        %v940 = vpop.f32.mrb[0].mxu0
        %v941 = vadd.f32 %v577, %v940
        %942 = vmatprep.mubr.bf16.mxu0 %v507
        %943 = vmatmul.mubr.bf16.gmra.mrb[0].mxu0 %v506
        %v944 = vpop.f32.mrb[0].mxu0
        %v945 = vadd.f32 %v573, %v944
        %v946 = vpop.f32.mrb[0].mxu0
        %v947 = vadd.f32 %v577, %v946
        %v948 = vpop.f32.mrb[0].mxu0
        %v949 = vadd.f32 %v573, %v948
        %v950 = vpop.f32.mrb[0].mxu0
        %v951 = vadd.f32 %v577, %v950
        %952 = vmatprep.mubr.bf16.mxu0 %v509
        %953 = vmatmul.mubr.bf16.gmra.mrb[0].mxu0 %v508
        %v954 = vpop.f32.mrb[0].mxu0
        %v955 = vadd.f32 %v573, %v954
        %v956 = vpop.f32.mrb[0].mxu0
        %v957 = vadd.f32 %v577, %v956
        %v958 = vpop.f32.mrb[0].mxu0
        %v959 = vadd.f32 %v573, %v958
        %v960 = vpop.f32.mrb[0].mxu0
        %v961 = vadd.f32 %v577, %v960
        %962 = vmatprep.mubr.bf16.mxu0 %v511
        %963 = vmatmul.mubr.bf16.gmra.mrb[0].mxu0 %v510
        %v964 = vpop.f32.mrb[0].mxu0
        %v965 = vadd.f32 %v573, %v964
        %v966 = vpop.f32.mrb[0].mxu0
        %v967 = vadd.f32 %v577, %v966
        %v968 = vpop.f32.mrb[0].mxu0
        %v969 = vadd.f32 %v573, %v968
        %v970 = vpop.f32.mrb[0].mxu0
        %v971 = vadd.f32 %v577, %v970
        %972 = vmatprep.mubr.bf16.mxu0 %v513
        %973 = vmatmul.mubr.bf16.gmra.mrb[0].mxu0 %v512
        %v974 = vpop.f32.mrb[0].mxu0
        %v975 = vadd.f32 %v573, %v974
        %v976 = vpop.f32.mrb[0].mxu0
        %v977 = vadd.f32 %v577, %v976
        %v978 = vpop.f32.mrb[0].mxu0
        %v979 = vadd.f32 %v573, %v978
        %v980 = vpop.f32.mrb[0].mxu0
        %v981 = vadd.f32 %v577, %v980
        %982 = vmatprep.mubr.bf16.mxu0 %v515
        %983 = vmatmul.mubr.bf16.gmra.mrb[0].mxu0 %v514
        %v984 = vpop.f32.mrb[0].mxu0
        %v985 = vadd.f32 %v573, %v984
        %v986 = vpop.f32.mrb[0].mxu0
        %v987 = vadd.f32 %v577, %v986
        %v988 = vpop.f32.mrb[0].mxu0
        %v989 = vadd.f32 %v573, %v988
        %v990 = vpop.f32.mrb[0].mxu0
        %v991 = vadd.f32 %v577, %v990
        %992 = vmatprep.mubr.bf16.mxu0 %v517
        %993 = vmatmul.mubr.bf16.gmra.mrb[0].mxu0 %v516
        %v994 = vpop.f32.mrb[0].mxu0
        %v995 = vadd.f32 %v573, %v994
        %v996 = vpop.f32.mrb[0].mxu0
        %v997 = vadd.f32 %v577, %v996
        %v998 = vpop.f32.mrb[0].mxu0
        %v999 = vadd.f32 %v573, %v998
        %v1000 = vpop.f32.mrb[0].mxu0
        %v1001 = vadd.f32 %v577, %v1000
        %1002 = vmatprep.mubr.bf16.mxu0 %v519
        %1003 = vmatmul.mubr.bf16.gmra.mrb[0].mxu0 %v518
        %v1004 = vpop.f32.mrb[0].mxu0
        %v1005 = vadd.f32 %v573, %v1004
        %v1006 = vpop.f32.mrb[0].mxu0
        %v1007 = vadd.f32 %v577, %v1006
        %v1008 = vpop.f32.mrb[0].mxu0
        %v1009 = vadd.f32 %v573, %v1008
        %v1010 = vpop.f32.mrb[0].mxu0
        %v1011 = vadd.f32 %v577, %v1010
        %1012 = vmatprep.mubr.bf16.mxu0 %v521
        %1013 = vmatmul.mubr.bf16.gmra.mrb[0].mxu0 %v520
        %v1014 = vpop.f32.mrb[0].mxu0
        %v1015 = vadd.f32 %v573, %v1014
        %v1016 = vpop.f32.mrb[0].mxu0
        %v1017 = vadd.f32 %v577, %v1016
        %v1018 = vpop.f32.mrb[0].mxu0
        %v1019 = vadd.f32 %v573, %v1018
        %v1020 = vpop.f32.mrb[0].mxu0
        %v1021 = vadd.f32 %v577, %v1020
        %1022 = vmatprep.mubr.bf16.mxu0 %v523
        %1023 = vmatmul.mubr.bf16.gmra.mrb[0].mxu0 %v522
        %v1024 = vpop.f32.mrb[0].mxu0
        %v1025 = vadd.f32 %v573, %v1024
        %v1026 = vpop.f32.mrb[0].mxu0
        %v1027 = vadd.f32 %v577, %v1026
        %v1028 = vpop.f32.mrb[0].mxu0
        %v1029 = vadd.f32 %v573, %v1028
        %v1030 = vpop.f32.mrb[0].mxu0
        %v1031 = vadd.f32 %v577, %v1030
        %1032 = vmatprep.mubr.bf16.mxu0 %v525
        %1033 = vmatmul.mubr.bf16.gmra.mrb[0].mxu0 %v524
        %v1034 = vpop.f32.mrb[0].mxu0
        %v1035 = vadd.f32 %v573, %v1034
        %v1036 = vpop.f32.mrb[0].mxu0
        %v1037 = vadd.f32 %v577, %v1036
        %v1038 = vpop.f32.mrb[0].mxu0
        %v1039 = vadd.f32 %v573, %v1038
        %v1040 = vpop.f32.mrb[0].mxu0
        %v1041 = vadd.f32 %v577, %v1040
        %1042 = vmatprep.mubr.bf16.mxu0 %v527
        %1043 = vmatmul.mubr.bf16.gmra.mrb[0].mxu0 %v526
        %v1044 = vpop.f32.mrb[0].mxu0
        %v1045 = vadd.f32 %v573, %v1044
        %v1046 = vpop.f32.mrb[0].mxu0
        %v1047 = vadd.f32 %v577, %v1046
        %v1048 = vpop.f32.mrb[0].mxu0
        %v1049 = vadd.f32 %v573, %v1048
        %v1050 = vpop.f32.mrb[0].mxu0
        %v1051 = vadd.f32 %v577, %v1050
        %1052 = vmatprep.mubr.bf16.mxu0 %v529
        %1053 = vmatmul.mubr.bf16.gmra.mrb[0].mxu0 %v528
        %v1054 = vpop.f32.mrb[0].mxu0
        %v1055 = vadd.f32 %v573, %v1054
        %v1056 = vpop.f32.mrb[0].mxu0
        %v1057 = vadd.f32 %v577, %v1056
        %v1058 = vpop.f32.mrb[0].mxu0
        %v1059 = vadd.f32 %v573, %v1058
        %v1060 = vpop.f32.mrb[0].mxu0
        %v1061 = vadd.f32 %v577, %v1060
        %1062 = vmatprep.mubr.bf16.mxu0 %v531
        %1063 = vmatmul.mubr.bf16.gmra.mrb[0].mxu0 %v530
        %v1064 = vpop.f32.mrb[0].mxu0
        %v1065 = vadd.f32 %v573, %v1064
        %v1066 = vpop.f32.mrb[0].mxu0
        %v1067 = vadd.f32 %v577, %v1066
        %v1068 = vpop.f32.mrb[0].mxu0
        %v1069 = vadd.f32 %v573, %v1068
        %v1070 = vpop.f32.mrb[0].mxu0
        %v1071 = vadd.f32 %v577, %v1070
        %1072 = vmatprep.mubr.bf16.mxu0 %v533
        %1073 = vmatmul.mubr.bf16.gmra.mrb[0].mxu0 %v532
        %v1074 = vpop.f32.mrb[0].mxu0
        %v1075 = vadd.f32 %v573, %v1074
        %v1076 = vpop.f32.mrb[0].mxu0
        %v1077 = vadd.f32 %v577, %v1076
        %v1078 = vpop.f32.mrb[0].mxu0
        %v1079 = vadd.f32 %v573, %v1078
        %v1080 = vpop.f32.mrb[0].mxu0
        %v1081 = vadd.f32 %v577, %v1080
        %1082 = vmatprep.mubr.bf16.mxu0 %v535
        %1083 = vmatmul.mubr.bf16.gmra.mrb[0].mxu0 %v534
        %v1084 = vpop.f32.mrb[0].mxu0
        %v1085 = vadd.f32 %v573, %v1084
        %v1086 = vpop.f32.mrb[0].mxu0
        %v1087 = vadd.f32 %v577, %v1086
        %v1088 = vpop.f32.mrb[0].mxu0
        %v1089 = vadd.f32 %v573, %v1088
        %v1090 = vpop.f32.mrb[0].mxu0
        %v1091 = vadd.f32 %v577, %v1090
        %1092 = vdwg.mxu0
        %v1093 = vmax.f32 %v775, 0.0
        %v1094 = vmax.f32 %v777, 0.0
        %v1095 = vmax.f32 %v779, 0.0
        %v1096 = vmax.f32 %v781, 0.0
        %v1097 = vmax.f32 %v785, 0.0
        %v1098 = vmax.f32 %v787, 0.0
        %v1099 = vmax.f32 %v789, 0.0
        %v1100 = vmax.f32 %v791, 0.0
        %v1101 = vmax.f32 %v795, 0.0
        %v1102 = vmax.f32 %v797, 0.0
        %v1103 = vmax.f32 %v799, 0.0
        %v1104 = vmax.f32 %v801, 0.0
        %v1105 = vmax.f32 %v805, 0.0
        %v1106 = vmax.f32 %v807, 0.0
        %v1107 = vmax.f32 %v809, 0.0
        %v1108 = vmax.f32 %v811, 0.0
        %v1109 = vmax.f32 %v815, 0.0
        %v1110 = vmax.f32 %v817, 0.0
        %v1111 = vmax.f32 %v819, 0.0
        %v1112 = vmax.f32 %v821, 0.0
        %v1113 = vmax.f32 %v825, 0.0
        %v1114 = vmax.f32 %v827, 0.0
        %v1115 = vmax.f32 %v829, 0.0
        %v1116 = vmax.f32 %v831, 0.0
        %v1117 = vmax.f32 %v835, 0.0
        %v1118 = vmax.f32 %v837, 0.0
        %v1119 = vmax.f32 %v839, 0.0
        %v1120 = vmax.f32 %v841, 0.0
        %v1121 = vmax.f32 %v845, 0.0
        %v1122 = vmax.f32 %v847, 0.0
        %v1123 = vmax.f32 %v849, 0.0
        %v1124 = vmax.f32 %v851, 0.0
        %v1125 = vmax.f32 %v855, 0.0
        %v1126 = vmax.f32 %v857, 0.0
        %v1127 = vmax.f32 %v859, 0.0
        %v1128 = vmax.f32 %v861, 0.0
        %v1129 = vmax.f32 %v865, 0.0
        %v1130 = vmax.f32 %v867, 0.0
        %v1131 = vmax.f32 %v869, 0.0
        %v1132 = vmax.f32 %v871, 0.0
        %v1133 = vmax.f32 %v875, 0.0
        %v1134 = vmax.f32 %v877, 0.0
        %v1135 = vmax.f32 %v879, 0.0
        %v1136 = vmax.f32 %v881, 0.0
        %v1137 = vmax.f32 %v885, 0.0
        %v1138 = vmax.f32 %v887, 0.0
        %v1139 = vmax.f32 %v889, 0.0
        %v1140 = vmax.f32 %v891, 0.0
        %v1141 = vmax.f32 %v895, 0.0
        %v1142 = vmax.f32 %v897, 0.0
        %v1143 = vmax.f32 %v899, 0.0
        %v1144 = vmax.f32 %v901, 0.0
        %v1145 = vmax.f32 %v905, 0.0
        %v1146 = vmax.f32 %v907, 0.0
        %v1147 = vmax.f32 %v909, 0.0
        %v1148 = vmax.f32 %v911, 0.0
        %v1149 = vmax.f32 %v915, 0.0
        %v1150 = vmax.f32 %v917, 0.0
        %v1151 = vmax.f32 %v919, 0.0
        %v1152 = vmax.f32 %v921, 0.0
        %v1153 = vmax.f32 %v925, 0.0
        %v1154 = vmax.f32 %v927, 0.0
        %v1155 = vmax.f32 %v929, 0.0
        %v1156 = vmax.f32 %v931, 0.0
        %v1157 = vmax.f32 %v935, 0.0
        %v1158 = vmax.f32 %v937, 0.0
        %v1159 = vmax.f32 %v939, 0.0
        %v1160 = vmax.f32 %v941, 0.0
        %v1161 = vmax.f32 %v945, 0.0
        %v1162 = vmax.f32 %v947, 0.0
        %v1163 = vmax.f32 %v949, 0.0
        %v1164 = vmax.f32 %v951, 0.0
        %v1165 = vmax.f32 %v955, 0.0
        %v1166 = vmax.f32 %v957, 0.0
        %v1167 = vmax.f32 %v959, 0.0
        %v1168 = vmax.f32 %v961, 0.0
        %v1169 = vmax.f32 %v965, 0.0
        %v1170 = vmax.f32 %v967, 0.0
        %v1171 = vmax.f32 %v969, 0.0
        %v1172 = vmax.f32 %v971, 0.0
        %v1173 = vmax.f32 %v975, 0.0
        %v1174 = vmax.f32 %v977, 0.0
        %v1175 = vmax.f32 %v979, 0.0
        %v1176 = vmax.f32 %v981, 0.0
        %v1177 = vmax.f32 %v985, 0.0
        %v1178 = vmax.f32 %v987, 0.0
        %v1179 = vmax.f32 %v989, 0.0
        %v1180 = vmax.f32 %v991, 0.0
        %v1181 = vmax.f32 %v995, 0.0
        %v1182 = vmax.f32 %v997, 0.0
        %v1183 = vmax.f32 %v999, 0.0
        %v1184 = vmax.f32 %v1001, 0.0
        %v1185 = vmax.f32 %v1005, 0.0
        %v1186 = vmax.f32 %v1007, 0.0
        %v1187 = vmax.f32 %v1009, 0.0
        %v1188 = vmax.f32 %v1011, 0.0
        %v1189 = vmax.f32 %v1015, 0.0
        %v1190 = vmax.f32 %v1017, 0.0
        %v1191 = vmax.f32 %v1019, 0.0
        %v1192 = vmax.f32 %v1021, 0.0
        %v1193 = vmax.f32 %v1025, 0.0
        %v1194 = vmax.f32 %v1027, 0.0
        %v1195 = vmax.f32 %v1029, 0.0
        %v1196 = vmax.f32 %v1031, 0.0
        %v1197 = vmax.f32 %v1035, 0.0
        %v1198 = vmax.f32 %v1037, 0.0
        %v1199 = vmax.f32 %v1039, 0.0
        %v1200 = vmax.f32 %v1041, 0.0
        %v1201 = vmax.f32 %v1045, 0.0
        %v1202 = vmax.f32 %v1047, 0.0
        %v1203 = vmax.f32 %v1049, 0.0
        %v1204 = vmax.f32 %v1051, 0.0
        %v1205 = vmax.f32 %v1055, 0.0
        %v1206 = vmax.f32 %v1057, 0.0
        %v1207 = vmax.f32 %v1059, 0.0
        %v1208 = vmax.f32 %v1061, 0.0
        %v1209 = vmax.f32 %v1065, 0.0
        %v1210 = vmax.f32 %v1067, 0.0
        %v1211 = vmax.f32 %v1069, 0.0
        %v1212 = vmax.f32 %v1071, 0.0
        %v1213 = vmax.f32 %v1075, 0.0
        %v1214 = vmax.f32 %v1077, 0.0
        %v1215 = vmax.f32 %v1079, 0.0
        %v1216 = vmax.f32 %v1081, 0.0
        %v1217 = vmax.f32 %v1085, 0.0
        %v1218 = vmax.f32 %v1087, 0.0
        %v1219 = vmax.f32 %v1089, 0.0
        %v1220 = vmax.f32 %v1091, 0.0
        %v1221 = vpack.c.bf16 %v1095, %v1093
        %v1222 = vpack.c.bf16 %v1096, %v1094
        %v1223 = vpack.c.bf16 %v1099, %v1097
        %v1224 = vpack.c.bf16 %v1100, %v1098
        %v1225 = vpack.c.bf16 %v1103, %v1101
        %v1226 = vpack.c.bf16 %v1104, %v1102
        %v1227 = vpack.c.bf16 %v1107, %v1105
        %v1228 = vpack.c.bf16 %v1108, %v1106
        %v1229 = vpack.c.bf16 %v1111, %v1109
        %v1230 = vpack.c.bf16 %v1112, %v1110
        %v1231 = vpack.c.bf16 %v1115, %v1113
        %v1232 = vpack.c.bf16 %v1116, %v1114
        %v1233 = vpack.c.bf16 %v1119, %v1117
        %v1234 = vpack.c.bf16 %v1120, %v1118
        %v1235 = vpack.c.bf16 %v1123, %v1121
        %v1236 = vpack.c.bf16 %v1124, %v1122
        %v1237 = vpack.c.bf16 %v1127, %v1125
        %v1238 = vpack.c.bf16 %v1128, %v1126
        %v1239 = vpack.c.bf16 %v1131, %v1129
        %v1240 = vpack.c.bf16 %v1132, %v1130
        %v1241 = vpack.c.bf16 %v1135, %v1133
        %v1242 = vpack.c.bf16 %v1136, %v1134
        %v1243 = vpack.c.bf16 %v1139, %v1137
        %v1244 = vpack.c.bf16 %v1140, %v1138
        %v1245 = vpack.c.bf16 %v1143, %v1141
        %v1246 = vpack.c.bf16 %v1144, %v1142
        %v1247 = vpack.c.bf16 %v1147, %v1145
        %v1248 = vpack.c.bf16 %v1148, %v1146
        %v1249 = vpack.c.bf16 %v1151, %v1149
        %v1250 = vpack.c.bf16 %v1152, %v1150
        %v1251 = vpack.c.bf16 %v1155, %v1153
        %v1252 = vpack.c.bf16 %v1156, %v1154
        %v1253 = vpack.c.bf16 %v1159, %v1157
        %v1254 = vpack.c.bf16 %v1160, %v1158
        %v1255 = vpack.c.bf16 %v1163, %v1161
        %v1256 = vpack.c.bf16 %v1164, %v1162
        %v1257 = vpack.c.bf16 %v1167, %v1165
        %v1258 = vpack.c.bf16 %v1168, %v1166
        %v1259 = vpack.c.bf16 %v1171, %v1169
        %v1260 = vpack.c.bf16 %v1172, %v1170
        %v1261 = vpack.c.bf16 %v1175, %v1173
        %v1262 = vpack.c.bf16 %v1176, %v1174
        %v1263 = vpack.c.bf16 %v1179, %v1177
        %v1264 = vpack.c.bf16 %v1180, %v1178
        %v1265 = vpack.c.bf16 %v1183, %v1181
        %v1266 = vpack.c.bf16 %v1184, %v1182
        %v1267 = vpack.c.bf16 %v1187, %v1185
        %v1268 = vpack.c.bf16 %v1188, %v1186
        %v1269 = vpack.c.bf16 %v1191, %v1189
        %v1270 = vpack.c.bf16 %v1192, %v1190
        %v1271 = vpack.c.bf16 %v1195, %v1193
        %v1272 = vpack.c.bf16 %v1196, %v1194
        %v1273 = vpack.c.bf16 %v1199, %v1197
        %v1274 = vpack.c.bf16 %v1200, %v1198
        %v1275 = vpack.c.bf16 %v1203, %v1201
        %v1276 = vpack.c.bf16 %v1204, %v1202
        %v1277 = vpack.c.bf16 %v1207, %v1205
        %v1278 = vpack.c.bf16 %v1208, %v1206
        %v1279 = vpack.c.bf16 %v1211, %v1209
        %v1280 = vpack.c.bf16 %v1212, %v1210
        %v1281 = vpack.c.bf16 %v1215, %v1213
        %v1282 = vpack.c.bf16 %v1216, %v1214
        %v1283 = vpack.c.bf16 %v1219, %v1217
        %v1284 = vpack.c.bf16 %v1220, %v1218
        %v1285 = vld [vmem:[#allocation7] sm:$0xff]
        %v1286 = vld [vmem:[#allocation7 + $0x8] sm:$0xff]
        %v1287 = vld [vmem:[#allocation7 + $0x10] sm:$0xff]
        %v1288 = vld [vmem:[#allocation7 + $0x18] sm:$0xff]
        %v1289 = vld [vmem:[#allocation7 + $0x20] sm:$0xff]
        %v1290 = vld [vmem:[#allocation7 + $0x28] sm:$0xff]
        %v1291 = vld [vmem:[#allocation7 + $0x30] sm:$0xff]
        %v1292 = vld [vmem:[#allocation7 + $0x38] sm:$0xff]
        %v1293 = vld [vmem:[#allocation7 + $0x40] sm:$0xff]
        %v1294 = vld [vmem:[#allocation7 + $0x48] sm:$0xff]
        %v1295 = vld [vmem:[#allocation7 + $0x50] sm:$0xff]
        %v1296 = vld [vmem:[#allocation7 + $0x58] sm:$0xff]
        %v1297 = vld [vmem:[#allocation7 + $0x60] sm:$0xff]
        %v1298 = vld [vmem:[#allocation7 + $0x68] sm:$0xff]
        %v1299 = vld [vmem:[#allocation7 + $0x70] sm:$0xff]
        %v1300 = vld [vmem:[#allocation7 + $0x78] sm:$0xff]
        %v1301 = vld [vmem:[#allocation7 + $0x80] sm:$0xff]
        %v1302 = vld [vmem:[#allocation7 + $0x88] sm:$0xff]
        %v1303 = vld [vmem:[#allocation7 + $0x90] sm:$0xff]
        %v1304 = vld [vmem:[#allocation7 + $0x98] sm:$0xff]
        %v1305 = vld [vmem:[#allocation7 + $0xa0] sm:$0xff]
        %v1306 = vld [vmem:[#allocation7 + $0xa8] sm:$0xff]
        %v1307 = vld [vmem:[#allocation7 + $0xb0] sm:$0xff]
        %v1308 = vld [vmem:[#allocation7 + $0xb8] sm:$0xff]
        %v1309 = vld [vmem:[#allocation7 + $0xc0] sm:$0xff]
        %v1310 = vld [vmem:[#allocation7 + $0xc8] sm:$0xff]
        %v1311 = vld [vmem:[#allocation7 + $0xd0] sm:$0xff]
        %v1312 = vld [vmem:[#allocation7 + $0xd8] sm:$0xff]
        %v1313 = vld [vmem:[#allocation7 + $0xe0] sm:$0xff]
        %v1314 = vld [vmem:[#allocation7 + $0xe8] sm:$0xff]
        %v1315 = vld [vmem:[#allocation7 + $0xf0] sm:$0xff]
        %v1316 = vld [vmem:[#allocation7 + $0xf8] sm:$0xff]
        %v1317 = vld [vmem:[%s4] sm:$0x3]
        %v1319 = vlaneseq
        %v1320 = vshrl.u32 %v1319, 7
        %v1321 = vsub.s32 0, %v1320
        %v1322 = vrot.slane %v1317, %v1321
        %v1323 = vlaneseq
        %v1324 = vshrl.u32 %v1323, 7
        %v1325 = vsub.s32 1, %v1324
        %v1326 = vrot.slane %v1317, %v1325
        %v1361 = vunpack.c.l.b16 %v1285
        %v1362 = vunpack.c.h.b16 %v1285
        %v1363 = vunpack.c.l.b16 %v1286
        %v1364 = vunpack.c.h.b16 %v1286
        %v1365 = vunpack.c.l.b16 %v1287
        %v1366 = vunpack.c.h.b16 %v1287
        %v1367 = vunpack.c.l.b16 %v1288
        %v1368 = vunpack.c.h.b16 %v1288
        %v1369 = vunpack.c.l.b16 %v1289
        %v1370 = vunpack.c.h.b16 %v1289
        %v1371 = vunpack.c.l.b16 %v1290
        %v1372 = vunpack.c.h.b16 %v1290
        %v1373 = vunpack.c.l.b16 %v1291
        %v1374 = vunpack.c.h.b16 %v1291
        %v1375 = vunpack.c.l.b16 %v1292
        %v1376 = vunpack.c.h.b16 %v1292
        %v1377 = vunpack.c.l.b16 %v1293
        %v1378 = vunpack.c.h.b16 %v1293
        %v1379 = vunpack.c.l.b16 %v1294
        %v1380 = vunpack.c.h.b16 %v1294
        %v1381 = vunpack.c.l.b16 %v1295
        %v1382 = vunpack.c.h.b16 %v1295
        %v1383 = vunpack.c.l.b16 %v1296
        %v1384 = vunpack.c.h.b16 %v1296
        %v1385 = vunpack.c.l.b16 %v1297
        %v1386 = vunpack.c.h.b16 %v1297
        %v1387 = vunpack.c.l.b16 %v1298
        %v1388 = vunpack.c.h.b16 %v1298
        %v1389 = vunpack.c.l.b16 %v1299
        %v1390 = vunpack.c.h.b16 %v1299
        %v1391 = vunpack.c.l.b16 %v1300
        %v1392 = vunpack.c.h.b16 %v1300
        %v1393 = vunpack.c.l.b16 %v1301
        %v1394 = vunpack.c.h.b16 %v1301
        %v1395 = vunpack.c.l.b16 %v1302
        %v1396 = vunpack.c.h.b16 %v1302
        %v1397 = vunpack.c.l.b16 %v1303
        %v1398 = vunpack.c.h.b16 %v1303
        %v1399 = vunpack.c.l.b16 %v1304
        %v1400 = vunpack.c.h.b16 %v1304
        %v1401 = vunpack.c.l.b16 %v1305
        %v1402 = vunpack.c.h.b16 %v1305
        %v1403 = vunpack.c.l.b16 %v1306
        %v1404 = vunpack.c.h.b16 %v1306
        %v1405 = vunpack.c.l.b16 %v1307
        %v1406 = vunpack.c.h.b16 %v1307
        %v1407 = vunpack.c.l.b16 %v1308
        %v1408 = vunpack.c.h.b16 %v1308
        %v1409 = vunpack.c.l.b16 %v1309
        %v1410 = vunpack.c.h.b16 %v1309
        %v1411 = vunpack.c.l.b16 %v1310
        %v1412 = vunpack.c.h.b16 %v1310
        %v1413 = vunpack.c.l.b16 %v1311
        %v1414 = vunpack.c.h.b16 %v1311
        %v1415 = vunpack.c.l.b16 %v1312
        %v1416 = vunpack.c.h.b16 %v1312
        %v1417 = vunpack.c.l.b16 %v1313
        %v1418 = vunpack.c.h.b16 %v1313
        %v1419 = vunpack.c.l.b16 %v1314
        %v1420 = vunpack.c.h.b16 %v1314
        %v1421 = vunpack.c.l.b16 %v1315
        %v1422 = vunpack.c.h.b16 %v1315
        %v1423 = vunpack.c.l.b16 %v1316
        %v1424 = vunpack.c.h.b16 %v1316
        %v1425 = vpack.c.b16 %v1363, %v1361
        %v1426 = vpack.c.b16 %v1364, %v1362
        %v1427 = vpack.c.b16 %v1367, %v1365
        %v1428 = vpack.c.b16 %v1368, %v1366
        %v1429 = vpack.c.b16 %v1371, %v1369
        %v1430 = vpack.c.b16 %v1372, %v1370
        %v1431 = vpack.c.b16 %v1375, %v1373
        %v1432 = vpack.c.b16 %v1376, %v1374
        %v1433 = vpack.c.b16 %v1379, %v1377
        %v1434 = vpack.c.b16 %v1380, %v1378
        %v1435 = vpack.c.b16 %v1383, %v1381
        %v1436 = vpack.c.b16 %v1384, %v1382
        %v1437 = vpack.c.b16 %v1387, %v1385
        %v1438 = vpack.c.b16 %v1388, %v1386
        %v1439 = vpack.c.b16 %v1391, %v1389
        %v1440 = vpack.c.b16 %v1392, %v1390
        %v1441 = vpack.c.b16 %v1395, %v1393
        %v1442 = vpack.c.b16 %v1396, %v1394
        %v1443 = vpack.c.b16 %v1399, %v1397
        %v1444 = vpack.c.b16 %v1400, %v1398
        %v1445 = vpack.c.b16 %v1403, %v1401
        %v1446 = vpack.c.b16 %v1404, %v1402
        %v1447 = vpack.c.b16 %v1407, %v1405
        %v1448 = vpack.c.b16 %v1408, %v1406
        %v1449 = vpack.c.b16 %v1411, %v1409
        %v1450 = vpack.c.b16 %v1412, %v1410
        %v1451 = vpack.c.b16 %v1415, %v1413
        %v1452 = vpack.c.b16 %v1416, %v1414
        %v1453 = vpack.c.b16 %v1419, %v1417
        %v1454 = vpack.c.b16 %v1420, %v1418
        %v1455 = vpack.c.b16 %v1423, %v1421
        %v1456 = vpack.c.b16 %v1424, %v1422
        %1489 = vmatprep.subr.bf16.mxu0 %v1426
        %1490 = vmatpush1.bf16.msra.mxu0 %v1425
        %1491 = vmatprep.subr.bf16.mxu0 %v1428
        %1492 = vmatpush1.bf16.msra.mxu0 %v1427
        %1493 = vmatprep.subr.bf16.mxu0 %v1430
        %1494 = vmatpush1.bf16.msra.mxu0 %v1429
        %1495 = vmatprep.subr.bf16.mxu0 %v1432
        %1496 = vmatpush1.bf16.msra.mxu0 %v1431
        %1497 = vmatprep.subr.bf16.mxu0 %v1434
        %1498 = vmatpush1.bf16.msra.mxu0 %v1433
        %1499 = vmatprep.subr.bf16.mxu0 %v1436
        %1500 = vmatpush1.bf16.msra.mxu0 %v1435
        %1501 = vmatprep.subr.bf16.mxu0 %v1438
        %1502 = vmatpush1.bf16.msra.mxu0 %v1437
        %1503 = vmatprep.subr.bf16.mxu0 %v1440
        %1504 = vmatpush1.bf16.msra.mxu0 %v1439
        %1505 = vmatprep.subr.bf16.mxu0 %v1442
        %1506 = vmatpush1.bf16.msra.mxu0 %v1441
        %1507 = vmatprep.subr.bf16.mxu0 %v1444
        %1508 = vmatpush1.bf16.msra.mxu0 %v1443
        %1509 = vmatprep.subr.bf16.mxu0 %v1446
        %1510 = vmatpush1.bf16.msra.mxu0 %v1445
        %1511 = vmatprep.subr.bf16.mxu0 %v1448
        %1512 = vmatpush1.bf16.msra.mxu0 %v1447
        %1513 = vmatprep.subr.bf16.mxu0 %v1450
        %1514 = vmatpush1.bf16.msra.mxu0 %v1449
        %1515 = vmatprep.subr.bf16.mxu0 %v1452
        %1516 = vmatpush1.bf16.msra.mxu0 %v1451
        %1517 = vmatprep.subr.bf16.mxu0 %v1454
        %1518 = vmatpush1.bf16.msra.mxu0 %v1453
        %1519 = vmatprep.subr.bf16.mxu0 %v1456
        %1520 = vmatpush1.bf16.msra.mxu0 %v1455
        %1521 = vmatprep.mubr.bf16.mxu0 %v1222
        %1522 = vmatmul.mubr.bf16.gmra.mrb[0].mxu0 %v1221
        %v1523 = vpop.f32.mrb[0].mxu0
        %v1524 = vadd.f32 %v1322, %v1523
        %v1525 = vpop.f32.mrb[0].mxu0
        %v1526 = vadd.f32 %v1326, %v1525
        %v1527 = vpop.f32.mrb[0].mxu0
        %v1528 = vadd.f32 %v1322, %v1527
        %v1529 = vpop.f32.mrb[0].mxu0
        %v1530 = vadd.f32 %v1326, %v1529
        %1531 = vmatprep.mubr.bf16.mxu0 %v1224
        %1532 = vmatmul.mubr.bf16.gmra.mrb[0].mxu0 %v1223
        %v1533 = vpop.f32.mrb[0].mxu0
        %v1534 = vadd.f32 %v1322, %v1533
        %v1535 = vpop.f32.mrb[0].mxu0
        %v1536 = vadd.f32 %v1326, %v1535
        %v1537 = vpop.f32.mrb[0].mxu0
        %v1538 = vadd.f32 %v1322, %v1537
        %v1539 = vpop.f32.mrb[0].mxu0
        %v1540 = vadd.f32 %v1326, %v1539
        %1541 = vmatprep.mubr.bf16.mxu0 %v1226
        %1542 = vmatmul.mubr.bf16.gmra.mrb[0].mxu0 %v1225
        %v1543 = vpop.f32.mrb[0].mxu0
        %v1544 = vadd.f32 %v1322, %v1543
        %v1545 = vpop.f32.mrb[0].mxu0
        %v1546 = vadd.f32 %v1326, %v1545
        %v1547 = vpop.f32.mrb[0].mxu0
        %v1548 = vadd.f32 %v1322, %v1547
        %v1549 = vpop.f32.mrb[0].mxu0
        %v1550 = vadd.f32 %v1326, %v1549
        %1551 = vmatprep.mubr.bf16.mxu0 %v1228
        %1552 = vmatmul.mubr.bf16.gmra.mrb[0].mxu0 %v1227
        %v1553 = vpop.f32.mrb[0].mxu0
        %v1554 = vadd.f32 %v1322, %v1553
        %v1555 = vpop.f32.mrb[0].mxu0
        %v1556 = vadd.f32 %v1326, %v1555
        %v1557 = vpop.f32.mrb[0].mxu0
        %v1558 = vadd.f32 %v1322, %v1557
        %v1559 = vpop.f32.mrb[0].mxu0
        %v1560 = vadd.f32 %v1326, %v1559
        %1561 = vmatprep.mubr.bf16.mxu0 %v1230
        %1562 = vmatmul.mubr.bf16.gmra.mrb[0].mxu0 %v1229
        %v1563 = vpop.f32.mrb[0].mxu0
        %v1564 = vadd.f32 %v1322, %v1563
        %v1565 = vpop.f32.mrb[0].mxu0
        %v1566 = vadd.f32 %v1326, %v1565
        %v1567 = vpop.f32.mrb[0].mxu0
        %v1568 = vadd.f32 %v1322, %v1567
        %v1569 = vpop.f32.mrb[0].mxu0
        %v1570 = vadd.f32 %v1326, %v1569
        %1571 = vmatprep.mubr.bf16.mxu0 %v1232
        %1572 = vmatmul.mubr.bf16.gmra.mrb[0].mxu0 %v1231
        %v1573 = vpop.f32.mrb[0].mxu0
        %v1574 = vadd.f32 %v1322, %v1573
        %v1575 = vpop.f32.mrb[0].mxu0
        %v1576 = vadd.f32 %v1326, %v1575
        %v1577 = vpop.f32.mrb[0].mxu0
        %v1578 = vadd.f32 %v1322, %v1577
        %v1579 = vpop.f32.mrb[0].mxu0
        %v1580 = vadd.f32 %v1326, %v1579
        %1581 = vmatprep.mubr.bf16.mxu0 %v1234
        %1582 = vmatmul.mubr.bf16.gmra.mrb[0].mxu0 %v1233
        %v1583 = vpop.f32.mrb[0].mxu0
        %v1584 = vadd.f32 %v1322, %v1583
        %v1585 = vpop.f32.mrb[0].mxu0
        %v1586 = vadd.f32 %v1326, %v1585
        %v1587 = vpop.f32.mrb[0].mxu0
        %v1588 = vadd.f32 %v1322, %v1587
        %v1589 = vpop.f32.mrb[0].mxu0
        %v1590 = vadd.f32 %v1326, %v1589
        %1591 = vmatprep.mubr.bf16.mxu0 %v1236
        %1592 = vmatmul.mubr.bf16.gmra.mrb[0].mxu0 %v1235
        %v1593 = vpop.f32.mrb[0].mxu0
        %v1594 = vadd.f32 %v1322, %v1593
        %v1595 = vpop.f32.mrb[0].mxu0
        %v1596 = vadd.f32 %v1326, %v1595
        %v1597 = vpop.f32.mrb[0].mxu0
        %v1598 = vadd.f32 %v1322, %v1597
        %v1599 = vpop.f32.mrb[0].mxu0
        %v1600 = vadd.f32 %v1326, %v1599
        %1601 = vmatprep.mubr.bf16.mxu0 %v1238
        %1602 = vmatmul.mubr.bf16.gmra.mrb[0].mxu0 %v1237
        %v1603 = vpop.f32.mrb[0].mxu0
        %v1604 = vadd.f32 %v1322, %v1603
        %v1605 = vpop.f32.mrb[0].mxu0
        %v1606 = vadd.f32 %v1326, %v1605
        %v1607 = vpop.f32.mrb[0].mxu0
        %v1608 = vadd.f32 %v1322, %v1607
        %v1609 = vpop.f32.mrb[0].mxu0
        %v1610 = vadd.f32 %v1326, %v1609
        %1611 = vmatprep.mubr.bf16.mxu0 %v1240
        %1612 = vmatmul.mubr.bf16.gmra.mrb[0].mxu0 %v1239
        %v1613 = vpop.f32.mrb[0].mxu0
        %v1614 = vadd.f32 %v1322, %v1613
        %v1615 = vpop.f32.mrb[0].mxu0
        %v1616 = vadd.f32 %v1326, %v1615
        %v1617 = vpop.f32.mrb[0].mxu0
        %v1618 = vadd.f32 %v1322, %v1617
        %v1619 = vpop.f32.mrb[0].mxu0
        %v1620 = vadd.f32 %v1326, %v1619
        %1621 = vmatprep.mubr.bf16.mxu0 %v1242
        %1622 = vmatmul.mubr.bf16.gmra.mrb[0].mxu0 %v1241
        %v1623 = vpop.f32.mrb[0].mxu0
        %v1624 = vadd.f32 %v1322, %v1623
        %v1625 = vpop.f32.mrb[0].mxu0
        %v1626 = vadd.f32 %v1326, %v1625
        %v1627 = vpop.f32.mrb[0].mxu0
        %v1628 = vadd.f32 %v1322, %v1627
        %v1629 = vpop.f32.mrb[0].mxu0
        %v1630 = vadd.f32 %v1326, %v1629
        %1631 = vmatprep.mubr.bf16.mxu0 %v1244
        %1632 = vmatmul.mubr.bf16.gmra.mrb[0].mxu0 %v1243
        %v1633 = vpop.f32.mrb[0].mxu0
        %v1634 = vadd.f32 %v1322, %v1633
        %v1635 = vpop.f32.mrb[0].mxu0
        %v1636 = vadd.f32 %v1326, %v1635
        %v1637 = vpop.f32.mrb[0].mxu0
        %v1638 = vadd.f32 %v1322, %v1637
        %v1639 = vpop.f32.mrb[0].mxu0
        %v1640 = vadd.f32 %v1326, %v1639
        %1641 = vmatprep.mubr.bf16.mxu0 %v1246
        %1642 = vmatmul.mubr.bf16.gmra.mrb[0].mxu0 %v1245
        %v1643 = vpop.f32.mrb[0].mxu0
        %v1644 = vadd.f32 %v1322, %v1643
        %v1645 = vpop.f32.mrb[0].mxu0
        %v1646 = vadd.f32 %v1326, %v1645
        %v1647 = vpop.f32.mrb[0].mxu0
        %v1648 = vadd.f32 %v1322, %v1647
        %v1649 = vpop.f32.mrb[0].mxu0
        %v1650 = vadd.f32 %v1326, %v1649
        %1651 = vmatprep.mubr.bf16.mxu0 %v1248
        %1652 = vmatmul.mubr.bf16.gmra.mrb[0].mxu0 %v1247
        %v1653 = vpop.f32.mrb[0].mxu0
        %v1654 = vadd.f32 %v1322, %v1653
        %v1655 = vpop.f32.mrb[0].mxu0
        %v1656 = vadd.f32 %v1326, %v1655
        %v1657 = vpop.f32.mrb[0].mxu0
        %v1658 = vadd.f32 %v1322, %v1657
        %v1659 = vpop.f32.mrb[0].mxu0
        %v1660 = vadd.f32 %v1326, %v1659
        %1661 = vmatprep.mubr.bf16.mxu0 %v1250
        %1662 = vmatmul.mubr.bf16.gmra.mrb[0].mxu0 %v1249
        %v1663 = vpop.f32.mrb[0].mxu0
        %v1664 = vadd.f32 %v1322, %v1663
        %v1665 = vpop.f32.mrb[0].mxu0
        %v1666 = vadd.f32 %v1326, %v1665
        %v1667 = vpop.f32.mrb[0].mxu0
        %v1668 = vadd.f32 %v1322, %v1667
        %v1669 = vpop.f32.mrb[0].mxu0
        %v1670 = vadd.f32 %v1326, %v1669
        %1671 = vmatprep.mubr.bf16.mxu0 %v1252
        %1672 = vmatmul.mubr.bf16.gmra.mrb[0].mxu0 %v1251
        %v1673 = vpop.f32.mrb[0].mxu0
        %v1674 = vadd.f32 %v1322, %v1673
        %v1675 = vpop.f32.mrb[0].mxu0
        %v1676 = vadd.f32 %v1326, %v1675
        %v1677 = vpop.f32.mrb[0].mxu0
        %v1678 = vadd.f32 %v1322, %v1677
        %v1679 = vpop.f32.mrb[0].mxu0
        %v1680 = vadd.f32 %v1326, %v1679
        %1681 = vmatprep.mubr.bf16.mxu0 %v1254
        %1682 = vmatmul.mubr.bf16.gmra.mrb[0].mxu0 %v1253
        %v1683 = vpop.f32.mrb[0].mxu0
        %v1684 = vadd.f32 %v1322, %v1683
        %v1685 = vpop.f32.mrb[0].mxu0
        %v1686 = vadd.f32 %v1326, %v1685
        %v1687 = vpop.f32.mrb[0].mxu0
        %v1688 = vadd.f32 %v1322, %v1687
        %v1689 = vpop.f32.mrb[0].mxu0
        %v1690 = vadd.f32 %v1326, %v1689
        %1691 = vmatprep.mubr.bf16.mxu0 %v1256
        %1692 = vmatmul.mubr.bf16.gmra.mrb[0].mxu0 %v1255
        %v1693 = vpop.f32.mrb[0].mxu0
        %v1694 = vadd.f32 %v1322, %v1693
        %v1695 = vpop.f32.mrb[0].mxu0
        %v1696 = vadd.f32 %v1326, %v1695
        %v1697 = vpop.f32.mrb[0].mxu0
        %v1698 = vadd.f32 %v1322, %v1697
        %v1699 = vpop.f32.mrb[0].mxu0
        %v1700 = vadd.f32 %v1326, %v1699
        %1701 = vmatprep.mubr.bf16.mxu0 %v1258
        %1702 = vmatmul.mubr.bf16.gmra.mrb[0].mxu0 %v1257
        %v1703 = vpop.f32.mrb[0].mxu0
        %v1704 = vadd.f32 %v1322, %v1703
        %v1705 = vpop.f32.mrb[0].mxu0
        %v1706 = vadd.f32 %v1326, %v1705
        %v1707 = vpop.f32.mrb[0].mxu0
        %v1708 = vadd.f32 %v1322, %v1707
        %v1709 = vpop.f32.mrb[0].mxu0
        %v1710 = vadd.f32 %v1326, %v1709
        %1711 = vmatprep.mubr.bf16.mxu0 %v1260
        %1712 = vmatmul.mubr.bf16.gmra.mrb[0].mxu0 %v1259
        %v1713 = vpop.f32.mrb[0].mxu0
        %v1714 = vadd.f32 %v1322, %v1713
        %v1715 = vpop.f32.mrb[0].mxu0
        %v1716 = vadd.f32 %v1326, %v1715
        %v1717 = vpop.f32.mrb[0].mxu0
        %v1718 = vadd.f32 %v1322, %v1717
        %v1719 = vpop.f32.mrb[0].mxu0
        %v1720 = vadd.f32 %v1326, %v1719
        %1721 = vmatprep.mubr.bf16.mxu0 %v1262
        %1722 = vmatmul.mubr.bf16.gmra.mrb[0].mxu0 %v1261
        %v1723 = vpop.f32.mrb[0].mxu0
        %v1724 = vadd.f32 %v1322, %v1723
        %v1725 = vpop.f32.mrb[0].mxu0
        %v1726 = vadd.f32 %v1326, %v1725
        %v1727 = vpop.f32.mrb[0].mxu0
        %v1728 = vadd.f32 %v1322, %v1727
        %v1729 = vpop.f32.mrb[0].mxu0
        %v1730 = vadd.f32 %v1326, %v1729
        %1731 = vmatprep.mubr.bf16.mxu0 %v1264
        %1732 = vmatmul.mubr.bf16.gmra.mrb[0].mxu0 %v1263
        %v1733 = vpop.f32.mrb[0].mxu0
        %v1734 = vadd.f32 %v1322, %v1733
        %v1735 = vpop.f32.mrb[0].mxu0
        %v1736 = vadd.f32 %v1326, %v1735
        %v1737 = vpop.f32.mrb[0].mxu0
        %v1738 = vadd.f32 %v1322, %v1737
        %v1739 = vpop.f32.mrb[0].mxu0
        %v1740 = vadd.f32 %v1326, %v1739
        %1741 = vmatprep.mubr.bf16.mxu0 %v1266
        %1742 = vmatmul.mubr.bf16.gmra.mrb[0].mxu0 %v1265
        %v1743 = vpop.f32.mrb[0].mxu0
        %v1744 = vadd.f32 %v1322, %v1743
        %v1745 = vpop.f32.mrb[0].mxu0
        %v1746 = vadd.f32 %v1326, %v1745
        %v1747 = vpop.f32.mrb[0].mxu0
        %v1748 = vadd.f32 %v1322, %v1747
        %v1749 = vpop.f32.mrb[0].mxu0
        %v1750 = vadd.f32 %v1326, %v1749
        %1751 = vmatprep.mubr.bf16.mxu0 %v1268
        %1752 = vmatmul.mubr.bf16.gmra.mrb[0].mxu0 %v1267
        %v1753 = vpop.f32.mrb[0].mxu0
        %v1754 = vadd.f32 %v1322, %v1753
        %v1755 = vpop.f32.mrb[0].mxu0
        %v1756 = vadd.f32 %v1326, %v1755
        %v1757 = vpop.f32.mrb[0].mxu0
        %v1758 = vadd.f32 %v1322, %v1757
        %v1759 = vpop.f32.mrb[0].mxu0
        %v1760 = vadd.f32 %v1326, %v1759
        %1761 = vmatprep.mubr.bf16.mxu0 %v1270
        %1762 = vmatmul.mubr.bf16.gmra.mrb[0].mxu0 %v1269
        %v1763 = vpop.f32.mrb[0].mxu0
        %v1764 = vadd.f32 %v1322, %v1763
        %v1765 = vpop.f32.mrb[0].mxu0
        %v1766 = vadd.f32 %v1326, %v1765
        %v1767 = vpop.f32.mrb[0].mxu0
        %v1768 = vadd.f32 %v1322, %v1767
        %v1769 = vpop.f32.mrb[0].mxu0
        %v1770 = vadd.f32 %v1326, %v1769
        %1771 = vmatprep.mubr.bf16.mxu0 %v1272
        %1772 = vmatmul.mubr.bf16.gmra.mrb[0].mxu0 %v1271
        %v1773 = vpop.f32.mrb[0].mxu0
        %v1774 = vadd.f32 %v1322, %v1773
        %v1775 = vpop.f32.mrb[0].mxu0
        %v1776 = vadd.f32 %v1326, %v1775
        %v1777 = vpop.f32.mrb[0].mxu0
        %v1778 = vadd.f32 %v1322, %v1777
        %v1779 = vpop.f32.mrb[0].mxu0
        %v1780 = vadd.f32 %v1326, %v1779
        %1781 = vmatprep.mubr.bf16.mxu0 %v1274
        %1782 = vmatmul.mubr.bf16.gmra.mrb[0].mxu0 %v1273
        %v1783 = vpop.f32.mrb[0].mxu0
        %v1784 = vadd.f32 %v1322, %v1783
        %v1785 = vpop.f32.mrb[0].mxu0
        %v1786 = vadd.f32 %v1326, %v1785
        %v1787 = vpop.f32.mrb[0].mxu0
        %v1788 = vadd.f32 %v1322, %v1787
        %v1789 = vpop.f32.mrb[0].mxu0
        %v1790 = vadd.f32 %v1326, %v1789
        %1791 = vmatprep.mubr.bf16.mxu0 %v1276
        %1792 = vmatmul.mubr.bf16.gmra.mrb[0].mxu0 %v1275
        %v1793 = vpop.f32.mrb[0].mxu0
        %v1794 = vadd.f32 %v1322, %v1793
        %v1795 = vpop.f32.mrb[0].mxu0
        %v1796 = vadd.f32 %v1326, %v1795
        %v1797 = vpop.f32.mrb[0].mxu0
        %v1798 = vadd.f32 %v1322, %v1797
        %v1799 = vpop.f32.mrb[0].mxu0
        %v1800 = vadd.f32 %v1326, %v1799
        %1801 = vmatprep.mubr.bf16.mxu0 %v1278
        %1802 = vmatmul.mubr.bf16.gmra.mrb[0].mxu0 %v1277
        %v1803 = vpop.f32.mrb[0].mxu0
        %v1804 = vadd.f32 %v1322, %v1803
        %v1805 = vpop.f32.mrb[0].mxu0
        %v1806 = vadd.f32 %v1326, %v1805
        %v1807 = vpop.f32.mrb[0].mxu0
        %v1808 = vadd.f32 %v1322, %v1807
        %v1809 = vpop.f32.mrb[0].mxu0
        %v1810 = vadd.f32 %v1326, %v1809
        %1811 = vmatprep.mubr.bf16.mxu0 %v1280
        %1812 = vmatmul.mubr.bf16.gmra.mrb[0].mxu0 %v1279
        %v1813 = vpop.f32.mrb[0].mxu0
        %v1814 = vadd.f32 %v1322, %v1813
        %v1815 = vpop.f32.mrb[0].mxu0
        %v1816 = vadd.f32 %v1326, %v1815
        %v1817 = vpop.f32.mrb[0].mxu0
        %v1818 = vadd.f32 %v1322, %v1817
        %v1819 = vpop.f32.mrb[0].mxu0
        %v1820 = vadd.f32 %v1326, %v1819
        %1821 = vmatprep.mubr.bf16.mxu0 %v1282
        %1822 = vmatmul.mubr.bf16.gmra.mrb[0].mxu0 %v1281
        %v1823 = vpop.f32.mrb[0].mxu0
        %v1824 = vadd.f32 %v1322, %v1823
        %v1825 = vpop.f32.mrb[0].mxu0
        %v1826 = vadd.f32 %v1326, %v1825
        %v1827 = vpop.f32.mrb[0].mxu0
        %v1828 = vadd.f32 %v1322, %v1827
        %v1829 = vpop.f32.mrb[0].mxu0
        %v1830 = vadd.f32 %v1326, %v1829
        %1831 = vmatprep.mubr.bf16.mxu0 %v1284
        %1832 = vmatmul.mubr.bf16.gmra.mrb[0].mxu0 %v1283
        %v1833 = vpop.f32.mrb[0].mxu0
        %v1834 = vadd.f32 %v1322, %v1833
        %v1835 = vpop.f32.mrb[0].mxu0
        %v1836 = vadd.f32 %v1326, %v1835
        %v1837 = vpop.f32.mrb[0].mxu0
        %v1838 = vadd.f32 %v1322, %v1837
        %v1839 = vpop.f32.mrb[0].mxu0
        %v1840 = vadd.f32 %v1326, %v1839
        %1841 = vdwg.mxu0
        %v1842 = vmax.f32 %v1524, 0.0
        %v1843 = vmax.f32 %v1526, 0.0
        %v1844 = vmax.f32 %v1528, 0.0
        %v1845 = vmax.f32 %v1530, 0.0
        %v1846 = vmax.f32 %v1534, 0.0
        %v1847 = vmax.f32 %v1536, 0.0
        %v1848 = vmax.f32 %v1538, 0.0
        %v1849 = vmax.f32 %v1540, 0.0
        %v1850 = vmax.f32 %v1544, 0.0
        %v1851 = vmax.f32 %v1546, 0.0
        %v1852 = vmax.f32 %v1548, 0.0
        %v1853 = vmax.f32 %v1550, 0.0
        %v1854 = vmax.f32 %v1554, 0.0
        %v1855 = vmax.f32 %v1556, 0.0
        %v1856 = vmax.f32 %v1558, 0.0
        %v1857 = vmax.f32 %v1560, 0.0
        %v1858 = vmax.f32 %v1564, 0.0
        %v1859 = vmax.f32 %v1566, 0.0
        %v1860 = vmax.f32 %v1568, 0.0
        %v1861 = vmax.f32 %v1570, 0.0
        %v1862 = vmax.f32 %v1574, 0.0
        %v1863 = vmax.f32 %v1576, 0.0
        %v1864 = vmax.f32 %v1578, 0.0
        %v1865 = vmax.f32 %v1580, 0.0
        %v1866 = vmax.f32 %v1584, 0.0
        %v1867 = vmax.f32 %v1586, 0.0
        %v1868 = vmax.f32 %v1588, 0.0
        %v1869 = vmax.f32 %v1590, 0.0
        %v1870 = vmax.f32 %v1594, 0.0
        %v1871 = vmax.f32 %v1596, 0.0
        %v1872 = vmax.f32 %v1598, 0.0
        %v1873 = vmax.f32 %v1600, 0.0
        %v1874 = vmax.f32 %v1604, 0.0
        %v1875 = vmax.f32 %v1606, 0.0
        %v1876 = vmax.f32 %v1608, 0.0
        %v1877 = vmax.f32 %v1610, 0.0
        %v1878 = vmax.f32 %v1614, 0.0
        %v1879 = vmax.f32 %v1616, 0.0
        %v1880 = vmax.f32 %v1618, 0.0
        %v1881 = vmax.f32 %v1620, 0.0
        %v1882 = vmax.f32 %v1624, 0.0
        %v1883 = vmax.f32 %v1626, 0.0
        %v1884 = vmax.f32 %v1628, 0.0
        %v1885 = vmax.f32 %v1630, 0.0
        %v1886 = vmax.f32 %v1634, 0.0
        %v1887 = vmax.f32 %v1636, 0.0
        %v1888 = vmax.f32 %v1638, 0.0
        %v1889 = vmax.f32 %v1640, 0.0
        %v1890 = vmax.f32 %v1644, 0.0
        %v1891 = vmax.f32 %v1646, 0.0
        %v1892 = vmax.f32 %v1648, 0.0
        %v1893 = vmax.f32 %v1650, 0.0
        %v1894 = vmax.f32 %v1654, 0.0
        %v1895 = vmax.f32 %v1656, 0.0
        %v1896 = vmax.f32 %v1658, 0.0
        %v1897 = vmax.f32 %v1660, 0.0
        %v1898 = vmax.f32 %v1664, 0.0
        %v1899 = vmax.f32 %v1666, 0.0
        %v1900 = vmax.f32 %v1668, 0.0
        %v1901 = vmax.f32 %v1670, 0.0
        %v1902 = vmax.f32 %v1674, 0.0
        %v1903 = vmax.f32 %v1676, 0.0
        %v1904 = vmax.f32 %v1678, 0.0
        %v1905 = vmax.f32 %v1680, 0.0
        %v1906 = vmax.f32 %v1684, 0.0
        %v1907 = vmax.f32 %v1686, 0.0
        %v1908 = vmax.f32 %v1688, 0.0
        %v1909 = vmax.f32 %v1690, 0.0
        %v1910 = vmax.f32 %v1694, 0.0
        %v1911 = vmax.f32 %v1696, 0.0
        %v1912 = vmax.f32 %v1698, 0.0
        %v1913 = vmax.f32 %v1700, 0.0
        %v1914 = vmax.f32 %v1704, 0.0
        %v1915 = vmax.f32 %v1706, 0.0
        %v1916 = vmax.f32 %v1708, 0.0
        %v1917 = vmax.f32 %v1710, 0.0
        %v1918 = vmax.f32 %v1714, 0.0
        %v1919 = vmax.f32 %v1716, 0.0
        %v1920 = vmax.f32 %v1718, 0.0
        %v1921 = vmax.f32 %v1720, 0.0
        %v1922 = vmax.f32 %v1724, 0.0
        %v1923 = vmax.f32 %v1726, 0.0
        %v1924 = vmax.f32 %v1728, 0.0
        %v1925 = vmax.f32 %v1730, 0.0
        %v1926 = vmax.f32 %v1734, 0.0
        %v1927 = vmax.f32 %v1736, 0.0
        %v1928 = vmax.f32 %v1738, 0.0
        %v1929 = vmax.f32 %v1740, 0.0
        %v1930 = vmax.f32 %v1744, 0.0
        %v1931 = vmax.f32 %v1746, 0.0
        %v1932 = vmax.f32 %v1748, 0.0
        %v1933 = vmax.f32 %v1750, 0.0
        %v1934 = vmax.f32 %v1754, 0.0
        %v1935 = vmax.f32 %v1756, 0.0
        %v1936 = vmax.f32 %v1758, 0.0
        %v1937 = vmax.f32 %v1760, 0.0
        %v1938 = vmax.f32 %v1764, 0.0
        %v1939 = vmax.f32 %v1766, 0.0
        %v1940 = vmax.f32 %v1768, 0.0
        %v1941 = vmax.f32 %v1770, 0.0
        %v1942 = vmax.f32 %v1774, 0.0
        %v1943 = vmax.f32 %v1776, 0.0
        %v1944 = vmax.f32 %v1778, 0.0
        %v1945 = vmax.f32 %v1780, 0.0
        %v1946 = vmax.f32 %v1784, 0.0
        %v1947 = vmax.f32 %v1786, 0.0
        %v1948 = vmax.f32 %v1788, 0.0
        %v1949 = vmax.f32 %v1790, 0.0
        %v1950 = vmax.f32 %v1794, 0.0
        %v1951 = vmax.f32 %v1796, 0.0
        %v1952 = vmax.f32 %v1798, 0.0
        %v1953 = vmax.f32 %v1800, 0.0
        %v1954 = vmax.f32 %v1804, 0.0
        %v1955 = vmax.f32 %v1806, 0.0
        %v1956 = vmax.f32 %v1808, 0.0
        %v1957 = vmax.f32 %v1810, 0.0
        %v1958 = vmax.f32 %v1814, 0.0
        %v1959 = vmax.f32 %v1816, 0.0
        %v1960 = vmax.f32 %v1818, 0.0
        %v1961 = vmax.f32 %v1820, 0.0
        %v1962 = vmax.f32 %v1824, 0.0
        %v1963 = vmax.f32 %v1826, 0.0
        %v1964 = vmax.f32 %v1828, 0.0
        %v1965 = vmax.f32 %v1830, 0.0
        %v1966 = vmax.f32 %v1834, 0.0
        %v1967 = vmax.f32 %v1836, 0.0
        %v1968 = vmax.f32 %v1838, 0.0
        %v1969 = vmax.f32 %v1840, 0.0
        %v1970 = vpack.c.bf16 %v1844, %v1842
        %v1971 = vpack.c.bf16 %v1845, %v1843
        %v1972 = vpack.c.bf16 %v1848, %v1846
        %v1973 = vpack.c.bf16 %v1849, %v1847
        %v1974 = vpack.c.bf16 %v1852, %v1850
        %v1975 = vpack.c.bf16 %v1853, %v1851
        %v1976 = vpack.c.bf16 %v1856, %v1854
        %v1977 = vpack.c.bf16 %v1857, %v1855
        %v1978 = vpack.c.bf16 %v1860, %v1858
        %v1979 = vpack.c.bf16 %v1861, %v1859
        %v1980 = vpack.c.bf16 %v1864, %v1862
        %v1981 = vpack.c.bf16 %v1865, %v1863
        %v1982 = vpack.c.bf16 %v1868, %v1866
        %v1983 = vpack.c.bf16 %v1869, %v1867
        %v1984 = vpack.c.bf16 %v1872, %v1870
        %v1985 = vpack.c.bf16 %v1873, %v1871
        %v1986 = vpack.c.bf16 %v1876, %v1874
        %v1987 = vpack.c.bf16 %v1877, %v1875
        %v1988 = vpack.c.bf16 %v1880, %v1878
        %v1989 = vpack.c.bf16 %v1881, %v1879
        %v1990 = vpack.c.bf16 %v1884, %v1882
        %v1991 = vpack.c.bf16 %v1885, %v1883
        %v1992 = vpack.c.bf16 %v1888, %v1886
        %v1993 = vpack.c.bf16 %v1889, %v1887
        %v1994 = vpack.c.bf16 %v1892, %v1890
        %v1995 = vpack.c.bf16 %v1893, %v1891
        %v1996 = vpack.c.bf16 %v1896, %v1894
        %v1997 = vpack.c.bf16 %v1897, %v1895
        %v1998 = vpack.c.bf16 %v1900, %v1898
        %v1999 = vpack.c.bf16 %v1901, %v1899
        %v2000 = vpack.c.bf16 %v1904, %v1902
        %v2001 = vpack.c.bf16 %v1905, %v1903
        %v2002 = vpack.c.bf16 %v1908, %v1906
        %v2003 = vpack.c.bf16 %v1909, %v1907
        %v2004 = vpack.c.bf16 %v1912, %v1910
        %v2005 = vpack.c.bf16 %v1913, %v1911
        %v2006 = vpack.c.bf16 %v1916, %v1914
        %v2007 = vpack.c.bf16 %v1917, %v1915
        %v2008 = vpack.c.bf16 %v1920, %v1918
        %v2009 = vpack.c.bf16 %v1921, %v1919
        %v2010 = vpack.c.bf16 %v1924, %v1922
        %v2011 = vpack.c.bf16 %v1925, %v1923
        %v2012 = vpack.c.bf16 %v1928, %v1926
        %v2013 = vpack.c.bf16 %v1929, %v1927
        %v2014 = vpack.c.bf16 %v1932, %v1930
        %v2015 = vpack.c.bf16 %v1933, %v1931
        %v2016 = vpack.c.bf16 %v1936, %v1934
        %v2017 = vpack.c.bf16 %v1937, %v1935
        %v2018 = vpack.c.bf16 %v1940, %v1938
        %v2019 = vpack.c.bf16 %v1941, %v1939
        %v2020 = vpack.c.bf16 %v1944, %v1942
        %v2021 = vpack.c.bf16 %v1945, %v1943
        %v2022 = vpack.c.bf16 %v1948, %v1946
        %v2023 = vpack.c.bf16 %v1949, %v1947
        %v2024 = vpack.c.bf16 %v1952, %v1950
        %v2025 = vpack.c.bf16 %v1953, %v1951
        %v2026 = vpack.c.bf16 %v1956, %v1954
        %v2027 = vpack.c.bf16 %v1957, %v1955
        %v2028 = vpack.c.bf16 %v1960, %v1958
        %v2029 = vpack.c.bf16 %v1961, %v1959
        %v2030 = vpack.c.bf16 %v1964, %v1962
        %v2031 = vpack.c.bf16 %v1965, %v1963
        %v2032 = vpack.c.bf16 %v1968, %v1966
        %v2033 = vpack.c.bf16 %v1969, %v1967
        %v2034 = vld [vmem:[#allocation8] sm:$0xff]
        %v2035 = vld [vmem:[#allocation8 + $0x8] sm:$0xff]
        %v2036 = vld [vmem:[#allocation8 + $0x10] sm:$0xff]
        %v2037 = vld [vmem:[#allocation8 + $0x18] sm:$0xff]
        %v2038 = vld [vmem:[#allocation8 + $0x20] sm:$0xff]
        %v2039 = vld [vmem:[#allocation8 + $0x28] sm:$0xff]
        %v2040 = vld [vmem:[#allocation8 + $0x30] sm:$0xff]
        %v2041 = vld [vmem:[#allocation8 + $0x38] sm:$0xff]
        %v2042 = vld [vmem:[#allocation8 + $0x40] sm:$0xff]
        %v2043 = vld [vmem:[#allocation8 + $0x48] sm:$0xff]
        %v2044 = vld [vmem:[#allocation8 + $0x50] sm:$0xff]
        %v2045 = vld [vmem:[#allocation8 + $0x58] sm:$0xff]
        %v2046 = vld [vmem:[#allocation8 + $0x60] sm:$0xff]
        %v2047 = vld [vmem:[#allocation8 + $0x68] sm:$0xff]
        %v2048 = vld [vmem:[#allocation8 + $0x70] sm:$0xff]
        %v2049 = vld [vmem:[#allocation8 + $0x78] sm:$0xff]
        %v2050 = vld [vmem:[#allocation8 + $0x80] sm:$0xff]
        %v2051 = vld [vmem:[#allocation8 + $0x88] sm:$0xff]
        %v2052 = vld [vmem:[#allocation8 + $0x90] sm:$0xff]
        %v2053 = vld [vmem:[#allocation8 + $0x98] sm:$0xff]
        %v2054 = vld [vmem:[#allocation8 + $0xa0] sm:$0xff]
        %v2055 = vld [vmem:[#allocation8 + $0xa8] sm:$0xff]
        %v2056 = vld [vmem:[#allocation8 + $0xb0] sm:$0xff]
        %v2057 = vld [vmem:[#allocation8 + $0xb8] sm:$0xff]
        %v2058 = vld [vmem:[#allocation8 + $0xc0] sm:$0xff]
        %v2059 = vld [vmem:[#allocation8 + $0xc8] sm:$0xff]
        %v2060 = vld [vmem:[#allocation8 + $0xd0] sm:$0xff]
        %v2061 = vld [vmem:[#allocation8 + $0xd8] sm:$0xff]
        %v2062 = vld [vmem:[#allocation8 + $0xe0] sm:$0xff]
        %v2063 = vld [vmem:[#allocation8 + $0xe8] sm:$0xff]
        %v2064 = vld [vmem:[#allocation8 + $0xf0] sm:$0xff]
        %v2065 = vld [vmem:[#allocation8 + $0xf8] sm:$0xff]
        %v2066 = vld [vmem:[%s6] sm:$0x3]
        %v2068 = vlaneseq
        %v2069 = vshrl.u32 %v2068, 7
        %v2070 = vsub.s32 0, %v2069
        %v2071 = vrot.slane %v2066, %v2070
        %v2072 = vlaneseq
        %v2073 = vshrl.u32 %v2072, 7
        %v2074 = vsub.s32 1, %v2073
        %v2075 = vrot.slane %v2066, %v2074
        %v2110 = vunpack.c.l.b16 %v2034
        %v2111 = vunpack.c.h.b16 %v2034
        %v2112 = vunpack.c.l.b16 %v2035
        %v2113 = vunpack.c.h.b16 %v2035
        %v2114 = vunpack.c.l.b16 %v2036
        %v2115 = vunpack.c.h.b16 %v2036
        %v2116 = vunpack.c.l.b16 %v2037
        %v2117 = vunpack.c.h.b16 %v2037
        %v2118 = vunpack.c.l.b16 %v2038
        %v2119 = vunpack.c.h.b16 %v2038
        %v2120 = vunpack.c.l.b16 %v2039
        %v2121 = vunpack.c.h.b16 %v2039
        %v2122 = vunpack.c.l.b16 %v2040
        %v2123 = vunpack.c.h.b16 %v2040
        %v2124 = vunpack.c.l.b16 %v2041
        %v2125 = vunpack.c.h.b16 %v2041
        %v2126 = vunpack.c.l.b16 %v2042
        %v2127 = vunpack.c.h.b16 %v2042
        %v2128 = vunpack.c.l.b16 %v2043
        %v2129 = vunpack.c.h.b16 %v2043
        %v2130 = vunpack.c.l.b16 %v2044
        %v2131 = vunpack.c.h.b16 %v2044
        %v2132 = vunpack.c.l.b16 %v2045
        %v2133 = vunpack.c.h.b16 %v2045
        %v2134 = vunpack.c.l.b16 %v2046
        %v2135 = vunpack.c.h.b16 %v2046
        %v2136 = vunpack.c.l.b16 %v2047
        %v2137 = vunpack.c.h.b16 %v2047
        %v2138 = vunpack.c.l.b16 %v2048
        %v2139 = vunpack.c.h.b16 %v2048
        %v2140 = vunpack.c.l.b16 %v2049
        %v2141 = vunpack.c.h.b16 %v2049
        %v2142 = vunpack.c.l.b16 %v2050
        %v2143 = vunpack.c.h.b16 %v2050
        %v2144 = vunpack.c.l.b16 %v2051
        %v2145 = vunpack.c.h.b16 %v2051
        %v2146 = vunpack.c.l.b16 %v2052
        %v2147 = vunpack.c.h.b16 %v2052
        %v2148 = vunpack.c.l.b16 %v2053
        %v2149 = vunpack.c.h.b16 %v2053
        %v2150 = vunpack.c.l.b16 %v2054
        %v2151 = vunpack.c.h.b16 %v2054
        %v2152 = vunpack.c.l.b16 %v2055
        %v2153 = vunpack.c.h.b16 %v2055
        %v2154 = vunpack.c.l.b16 %v2056
        %v2155 = vunpack.c.h.b16 %v2056
        %v2156 = vunpack.c.l.b16 %v2057
        %v2157 = vunpack.c.h.b16 %v2057
        %v2158 = vunpack.c.l.b16 %v2058
        %v2159 = vunpack.c.h.b16 %v2058
        %v2160 = vunpack.c.l.b16 %v2059
        %v2161 = vunpack.c.h.b16 %v2059
        %v2162 = vunpack.c.l.b16 %v2060
        %v2163 = vunpack.c.h.b16 %v2060
        %v2164 = vunpack.c.l.b16 %v2061
        %v2165 = vunpack.c.h.b16 %v2061
        %v2166 = vunpack.c.l.b16 %v2062
        %v2167 = vunpack.c.h.b16 %v2062
        %v2168 = vunpack.c.l.b16 %v2063
        %v2169 = vunpack.c.h.b16 %v2063
        %v2170 = vunpack.c.l.b16 %v2064
        %v2171 = vunpack.c.h.b16 %v2064
        %v2172 = vunpack.c.l.b16 %v2065
        %v2173 = vunpack.c.h.b16 %v2065
        %v2174 = vpack.c.b16 %v2112, %v2110
        %v2175 = vpack.c.b16 %v2113, %v2111
        %v2176 = vpack.c.b16 %v2116, %v2114
        %v2177 = vpack.c.b16 %v2117, %v2115
        %v2178 = vpack.c.b16 %v2120, %v2118
        %v2179 = vpack.c.b16 %v2121, %v2119
        %v2180 = vpack.c.b16 %v2124, %v2122
        %v2181 = vpack.c.b16 %v2125, %v2123
        %v2182 = vpack.c.b16 %v2128, %v2126
        %v2183 = vpack.c.b16 %v2129, %v2127
        %v2184 = vpack.c.b16 %v2132, %v2130
        %v2185 = vpack.c.b16 %v2133, %v2131
        %v2186 = vpack.c.b16 %v2136, %v2134
        %v2187 = vpack.c.b16 %v2137, %v2135
        %v2188 = vpack.c.b16 %v2140, %v2138
        %v2189 = vpack.c.b16 %v2141, %v2139
        %v2190 = vpack.c.b16 %v2144, %v2142
        %v2191 = vpack.c.b16 %v2145, %v2143
        %v2192 = vpack.c.b16 %v2148, %v2146
        %v2193 = vpack.c.b16 %v2149, %v2147
        %v2194 = vpack.c.b16 %v2152, %v2150
        %v2195 = vpack.c.b16 %v2153, %v2151
        %v2196 = vpack.c.b16 %v2156, %v2154
        %v2197 = vpack.c.b16 %v2157, %v2155
        %v2198 = vpack.c.b16 %v2160, %v2158
        %v2199 = vpack.c.b16 %v2161, %v2159
        %v2200 = vpack.c.b16 %v2164, %v2162
        %v2201 = vpack.c.b16 %v2165, %v2163
        %v2202 = vpack.c.b16 %v2168, %v2166
        %v2203 = vpack.c.b16 %v2169, %v2167
        %v2204 = vpack.c.b16 %v2172, %v2170
        %v2205 = vpack.c.b16 %v2173, %v2171
        %2238 = vmatprep.subr.bf16.mxu0 %v2175
        %2239 = vmatpush1.bf16.msra.mxu0 %v2174
        %2240 = vmatprep.subr.bf16.mxu0 %v2177
        %2241 = vmatpush1.bf16.msra.mxu0 %v2176
        %2242 = vmatprep.subr.bf16.mxu0 %v2179
        %2243 = vmatpush1.bf16.msra.mxu0 %v2178
        %2244 = vmatprep.subr.bf16.mxu0 %v2181
        %2245 = vmatpush1.bf16.msra.mxu0 %v2180
        %2246 = vmatprep.subr.bf16.mxu0 %v2183
        %2247 = vmatpush1.bf16.msra.mxu0 %v2182
        %2248 = vmatprep.subr.bf16.mxu0 %v2185
        %2249 = vmatpush1.bf16.msra.mxu0 %v2184
        %2250 = vmatprep.subr.bf16.mxu0 %v2187
        %2251 = vmatpush1.bf16.msra.mxu0 %v2186
        %2252 = vmatprep.subr.bf16.mxu0 %v2189
        %2253 = vmatpush1.bf16.msra.mxu0 %v2188
        %2254 = vmatprep.subr.bf16.mxu0 %v2191
        %2255 = vmatpush1.bf16.msra.mxu0 %v2190
        %2256 = vmatprep.subr.bf16.mxu0 %v2193
        %2257 = vmatpush1.bf16.msra.mxu0 %v2192
        %2258 = vmatprep.subr.bf16.mxu0 %v2195
        %2259 = vmatpush1.bf16.msra.mxu0 %v2194
        %2260 = vmatprep.subr.bf16.mxu0 %v2197
        %2261 = vmatpush1.bf16.msra.mxu0 %v2196
        %2262 = vmatprep.subr.bf16.mxu0 %v2199
        %2263 = vmatpush1.bf16.msra.mxu0 %v2198
        %2264 = vmatprep.subr.bf16.mxu0 %v2201
        %2265 = vmatpush1.bf16.msra.mxu0 %v2200
        %2266 = vmatprep.subr.bf16.mxu0 %v2203
        %2267 = vmatpush1.bf16.msra.mxu0 %v2202
        %2268 = vmatprep.subr.bf16.mxu0 %v2205
        %2269 = vmatpush1.bf16.msra.mxu0 %v2204
        %2270 = vmatprep.mubr.bf16.mxu0 %v1971
        %2271 = vmatmul.mubr.bf16.gmra.mrb[0].mxu0 %v1970
        %v2272 = vpop.f32.mrb[0].mxu0
        %v2273 = vadd.f32 %v2071, %v2272
        %v2274 = vpop.f32.mrb[0].mxu0
        %v2275 = vadd.f32 %v2075, %v2274
        %v2276 = vpop.f32.mrb[0].mxu0
        %v2277 = vadd.f32 %v2071, %v2276
        %v2278 = vpop.f32.mrb[0].mxu0
        %v2279 = vadd.f32 %v2075, %v2278
        %2280 = vmatprep.mubr.bf16.mxu0 %v1973
        %2281 = vmatmul.mubr.bf16.gmra.mrb[0].mxu0 %v1972
        %v2282 = vpop.f32.mrb[0].mxu0
        %v2283 = vadd.f32 %v2071, %v2282
        %v2284 = vpop.f32.mrb[0].mxu0
        %v2285 = vadd.f32 %v2075, %v2284
        %v2286 = vpop.f32.mrb[0].mxu0
        %v2287 = vadd.f32 %v2071, %v2286
        %v2288 = vpop.f32.mrb[0].mxu0
        %v2289 = vadd.f32 %v2075, %v2288
        %2290 = vmatprep.mubr.bf16.mxu0 %v1975
        %2291 = vmatmul.mubr.bf16.gmra.mrb[0].mxu0 %v1974
        %v2292 = vpop.f32.mrb[0].mxu0
        %v2293 = vadd.f32 %v2071, %v2292
        %v2294 = vpop.f32.mrb[0].mxu0
        %v2295 = vadd.f32 %v2075, %v2294
        %v2296 = vpop.f32.mrb[0].mxu0
        %v2297 = vadd.f32 %v2071, %v2296
        %v2298 = vpop.f32.mrb[0].mxu0
        %v2299 = vadd.f32 %v2075, %v2298
        %2300 = vmatprep.mubr.bf16.mxu0 %v1977
        %2301 = vmatmul.mubr.bf16.gmra.mrb[0].mxu0 %v1976
        %v2302 = vpop.f32.mrb[0].mxu0
        %v2303 = vadd.f32 %v2071, %v2302
        %v2304 = vpop.f32.mrb[0].mxu0
        %v2305 = vadd.f32 %v2075, %v2304
        %v2306 = vpop.f32.mrb[0].mxu0
        %v2307 = vadd.f32 %v2071, %v2306
        %v2308 = vpop.f32.mrb[0].mxu0
        %v2309 = vadd.f32 %v2075, %v2308
        %2310 = vmatprep.mubr.bf16.mxu0 %v1979
        %2311 = vmatmul.mubr.bf16.gmra.mrb[0].mxu0 %v1978
        %v2312 = vpop.f32.mrb[0].mxu0
        %v2313 = vadd.f32 %v2071, %v2312
        %v2314 = vpop.f32.mrb[0].mxu0
        %v2315 = vadd.f32 %v2075, %v2314
        %v2316 = vpop.f32.mrb[0].mxu0
        %v2317 = vadd.f32 %v2071, %v2316
        %v2318 = vpop.f32.mrb[0].mxu0
        %v2319 = vadd.f32 %v2075, %v2318
        %2320 = vmatprep.mubr.bf16.mxu0 %v1981
        %2321 = vmatmul.mubr.bf16.gmra.mrb[0].mxu0 %v1980
        %v2322 = vpop.f32.mrb[0].mxu0
        %v2323 = vadd.f32 %v2071, %v2322
        %v2324 = vpop.f32.mrb[0].mxu0
        %v2325 = vadd.f32 %v2075, %v2324
        %v2326 = vpop.f32.mrb[0].mxu0
        %v2327 = vadd.f32 %v2071, %v2326
        %v2328 = vpop.f32.mrb[0].mxu0
        %v2329 = vadd.f32 %v2075, %v2328
        %2330 = vmatprep.mubr.bf16.mxu0 %v1983
        %2331 = vmatmul.mubr.bf16.gmra.mrb[0].mxu0 %v1982
        %v2332 = vpop.f32.mrb[0].mxu0
        %v2333 = vadd.f32 %v2071, %v2332
        %v2334 = vpop.f32.mrb[0].mxu0
        %v2335 = vadd.f32 %v2075, %v2334
        %v2336 = vpop.f32.mrb[0].mxu0
        %v2337 = vadd.f32 %v2071, %v2336
        %v2338 = vpop.f32.mrb[0].mxu0
        %v2339 = vadd.f32 %v2075, %v2338
        %2340 = vmatprep.mubr.bf16.mxu0 %v1985
        %2341 = vmatmul.mubr.bf16.gmra.mrb[0].mxu0 %v1984
        %v2342 = vpop.f32.mrb[0].mxu0
        %v2343 = vadd.f32 %v2071, %v2342
        %v2344 = vpop.f32.mrb[0].mxu0
        %v2345 = vadd.f32 %v2075, %v2344
        %v2346 = vpop.f32.mrb[0].mxu0
        %v2347 = vadd.f32 %v2071, %v2346
        %v2348 = vpop.f32.mrb[0].mxu0
        %v2349 = vadd.f32 %v2075, %v2348
        %2350 = vmatprep.mubr.bf16.mxu0 %v1987
        %2351 = vmatmul.mubr.bf16.gmra.mrb[0].mxu0 %v1986
        %v2352 = vpop.f32.mrb[0].mxu0
        %v2353 = vadd.f32 %v2071, %v2352
        %v2354 = vpop.f32.mrb[0].mxu0
        %v2355 = vadd.f32 %v2075, %v2354
        %v2356 = vpop.f32.mrb[0].mxu0
        %v2357 = vadd.f32 %v2071, %v2356
        %v2358 = vpop.f32.mrb[0].mxu0
        %v2359 = vadd.f32 %v2075, %v2358
        %2360 = vmatprep.mubr.bf16.mxu0 %v1989
        %2361 = vmatmul.mubr.bf16.gmra.mrb[0].mxu0 %v1988
        %v2362 = vpop.f32.mrb[0].mxu0
        %v2363 = vadd.f32 %v2071, %v2362
        %v2364 = vpop.f32.mrb[0].mxu0
        %v2365 = vadd.f32 %v2075, %v2364
        %v2366 = vpop.f32.mrb[0].mxu0
        %v2367 = vadd.f32 %v2071, %v2366
        %v2368 = vpop.f32.mrb[0].mxu0
        %v2369 = vadd.f32 %v2075, %v2368
        %2370 = vmatprep.mubr.bf16.mxu0 %v1991
        %2371 = vmatmul.mubr.bf16.gmra.mrb[0].mxu0 %v1990
        %v2372 = vpop.f32.mrb[0].mxu0
        %v2373 = vadd.f32 %v2071, %v2372
        %v2374 = vpop.f32.mrb[0].mxu0
        %v2375 = vadd.f32 %v2075, %v2374
        %v2376 = vpop.f32.mrb[0].mxu0
        %v2377 = vadd.f32 %v2071, %v2376
        %v2378 = vpop.f32.mrb[0].mxu0
        %v2379 = vadd.f32 %v2075, %v2378
        %2380 = vmatprep.mubr.bf16.mxu0 %v1993
        %2381 = vmatmul.mubr.bf16.gmra.mrb[0].mxu0 %v1992
        %v2382 = vpop.f32.mrb[0].mxu0
        %v2383 = vadd.f32 %v2071, %v2382
        %v2384 = vpop.f32.mrb[0].mxu0
        %v2385 = vadd.f32 %v2075, %v2384
        %v2386 = vpop.f32.mrb[0].mxu0
        %v2387 = vadd.f32 %v2071, %v2386
        %v2388 = vpop.f32.mrb[0].mxu0
        %v2389 = vadd.f32 %v2075, %v2388
        %2390 = vmatprep.mubr.bf16.mxu0 %v1995
        %2391 = vmatmul.mubr.bf16.gmra.mrb[0].mxu0 %v1994
        %v2392 = vpop.f32.mrb[0].mxu0
        %v2393 = vadd.f32 %v2071, %v2392
        %v2394 = vpop.f32.mrb[0].mxu0
        %v2395 = vadd.f32 %v2075, %v2394
        %v2396 = vpop.f32.mrb[0].mxu0
        %v2397 = vadd.f32 %v2071, %v2396
        %v2398 = vpop.f32.mrb[0].mxu0
        %v2399 = vadd.f32 %v2075, %v2398
        %2400 = vmatprep.mubr.bf16.mxu0 %v1997
        %2401 = vmatmul.mubr.bf16.gmra.mrb[0].mxu0 %v1996
        %v2402 = vpop.f32.mrb[0].mxu0
        %v2403 = vadd.f32 %v2071, %v2402
        %v2404 = vpop.f32.mrb[0].mxu0
        %v2405 = vadd.f32 %v2075, %v2404
        %v2406 = vpop.f32.mrb[0].mxu0
        %v2407 = vadd.f32 %v2071, %v2406
        %v2408 = vpop.f32.mrb[0].mxu0
        %v2409 = vadd.f32 %v2075, %v2408
        %2410 = vmatprep.mubr.bf16.mxu0 %v1999
        %2411 = vmatmul.mubr.bf16.gmra.mrb[0].mxu0 %v1998
        %v2412 = vpop.f32.mrb[0].mxu0
        %v2413 = vadd.f32 %v2071, %v2412
        %v2414 = vpop.f32.mrb[0].mxu0
        %v2415 = vadd.f32 %v2075, %v2414
        %v2416 = vpop.f32.mrb[0].mxu0
        %v2417 = vadd.f32 %v2071, %v2416
        %v2418 = vpop.f32.mrb[0].mxu0
        %v2419 = vadd.f32 %v2075, %v2418
        %2420 = vmatprep.mubr.bf16.mxu0 %v2001
        %2421 = vmatmul.mubr.bf16.gmra.mrb[0].mxu0 %v2000
        %v2422 = vpop.f32.mrb[0].mxu0
        %v2423 = vadd.f32 %v2071, %v2422
        %v2424 = vpop.f32.mrb[0].mxu0
        %v2425 = vadd.f32 %v2075, %v2424
        %v2426 = vpop.f32.mrb[0].mxu0
        %v2427 = vadd.f32 %v2071, %v2426
        %v2428 = vpop.f32.mrb[0].mxu0
        %v2429 = vadd.f32 %v2075, %v2428
        %2430 = vmatprep.mubr.bf16.mxu0 %v2003
        %2431 = vmatmul.mubr.bf16.gmra.mrb[0].mxu0 %v2002
        %v2432 = vpop.f32.mrb[0].mxu0
        %v2433 = vadd.f32 %v2071, %v2432
        %v2434 = vpop.f32.mrb[0].mxu0
        %v2435 = vadd.f32 %v2075, %v2434
        %v2436 = vpop.f32.mrb[0].mxu0
        %v2437 = vadd.f32 %v2071, %v2436
        %v2438 = vpop.f32.mrb[0].mxu0
        %v2439 = vadd.f32 %v2075, %v2438
        %2440 = vmatprep.mubr.bf16.mxu0 %v2005
        %2441 = vmatmul.mubr.bf16.gmra.mrb[0].mxu0 %v2004
        %v2442 = vpop.f32.mrb[0].mxu0
        %v2443 = vadd.f32 %v2071, %v2442
        %v2444 = vpop.f32.mrb[0].mxu0
        %v2445 = vadd.f32 %v2075, %v2444
        %v2446 = vpop.f32.mrb[0].mxu0
        %v2447 = vadd.f32 %v2071, %v2446
        %v2448 = vpop.f32.mrb[0].mxu0
        %v2449 = vadd.f32 %v2075, %v2448
        %2450 = vmatprep.mubr.bf16.mxu0 %v2007
        %2451 = vmatmul.mubr.bf16.gmra.mrb[0].mxu0 %v2006
        %v2452 = vpop.f32.mrb[0].mxu0
        %v2453 = vadd.f32 %v2071, %v2452
        %v2454 = vpop.f32.mrb[0].mxu0
        %v2455 = vadd.f32 %v2075, %v2454
        %v2456 = vpop.f32.mrb[0].mxu0
        %v2457 = vadd.f32 %v2071, %v2456
        %v2458 = vpop.f32.mrb[0].mxu0
        %v2459 = vadd.f32 %v2075, %v2458
        %2460 = vmatprep.mubr.bf16.mxu0 %v2009
        %2461 = vmatmul.mubr.bf16.gmra.mrb[0].mxu0 %v2008
        %v2462 = vpop.f32.mrb[0].mxu0
        %v2463 = vadd.f32 %v2071, %v2462
        %v2464 = vpop.f32.mrb[0].mxu0
        %v2465 = vadd.f32 %v2075, %v2464
        %v2466 = vpop.f32.mrb[0].mxu0
        %v2467 = vadd.f32 %v2071, %v2466
        %v2468 = vpop.f32.mrb[0].mxu0
        %v2469 = vadd.f32 %v2075, %v2468
        %2470 = vmatprep.mubr.bf16.mxu0 %v2011
        %2471 = vmatmul.mubr.bf16.gmra.mrb[0].mxu0 %v2010
        %v2472 = vpop.f32.mrb[0].mxu0
        %v2473 = vadd.f32 %v2071, %v2472
        %v2474 = vpop.f32.mrb[0].mxu0
        %v2475 = vadd.f32 %v2075, %v2474
        %v2476 = vpop.f32.mrb[0].mxu0
        %v2477 = vadd.f32 %v2071, %v2476
        %v2478 = vpop.f32.mrb[0].mxu0
        %v2479 = vadd.f32 %v2075, %v2478
        %2480 = vmatprep.mubr.bf16.mxu0 %v2013
        %2481 = vmatmul.mubr.bf16.gmra.mrb[0].mxu0 %v2012
        %v2482 = vpop.f32.mrb[0].mxu0
        %v2483 = vadd.f32 %v2071, %v2482
        %v2484 = vpop.f32.mrb[0].mxu0
        %v2485 = vadd.f32 %v2075, %v2484
        %v2486 = vpop.f32.mrb[0].mxu0
        %v2487 = vadd.f32 %v2071, %v2486
        %v2488 = vpop.f32.mrb[0].mxu0
        %v2489 = vadd.f32 %v2075, %v2488
        %2490 = vmatprep.mubr.bf16.mxu0 %v2015
        %2491 = vmatmul.mubr.bf16.gmra.mrb[0].mxu0 %v2014
        %v2492 = vpop.f32.mrb[0].mxu0
        %v2493 = vadd.f32 %v2071, %v2492
        %v2494 = vpop.f32.mrb[0].mxu0
        %v2495 = vadd.f32 %v2075, %v2494
        %v2496 = vpop.f32.mrb[0].mxu0
        %v2497 = vadd.f32 %v2071, %v2496
        %v2498 = vpop.f32.mrb[0].mxu0
        %v2499 = vadd.f32 %v2075, %v2498
        %2500 = vmatprep.mubr.bf16.mxu0 %v2017
        %2501 = vmatmul.mubr.bf16.gmra.mrb[0].mxu0 %v2016
        %v2502 = vpop.f32.mrb[0].mxu0
        %v2503 = vadd.f32 %v2071, %v2502
        %v2504 = vpop.f32.mrb[0].mxu0
        %v2505 = vadd.f32 %v2075, %v2504
        %v2506 = vpop.f32.mrb[0].mxu0
        %v2507 = vadd.f32 %v2071, %v2506
        %v2508 = vpop.f32.mrb[0].mxu0
        %v2509 = vadd.f32 %v2075, %v2508
        %2510 = vmatprep.mubr.bf16.mxu0 %v2019
        %2511 = vmatmul.mubr.bf16.gmra.mrb[0].mxu0 %v2018
        %v2512 = vpop.f32.mrb[0].mxu0
        %v2513 = vadd.f32 %v2071, %v2512
        %v2514 = vpop.f32.mrb[0].mxu0
        %v2515 = vadd.f32 %v2075, %v2514
        %v2516 = vpop.f32.mrb[0].mxu0
        %v2517 = vadd.f32 %v2071, %v2516
        %v2518 = vpop.f32.mrb[0].mxu0
        %v2519 = vadd.f32 %v2075, %v2518
        %2520 = vmatprep.mubr.bf16.mxu0 %v2021
        %2521 = vmatmul.mubr.bf16.gmra.mrb[0].mxu0 %v2020
        %v2522 = vpop.f32.mrb[0].mxu0
        %v2523 = vadd.f32 %v2071, %v2522
        %v2524 = vpop.f32.mrb[0].mxu0
        %v2525 = vadd.f32 %v2075, %v2524
        %v2526 = vpop.f32.mrb[0].mxu0
        %v2527 = vadd.f32 %v2071, %v2526
        %v2528 = vpop.f32.mrb[0].mxu0
        %v2529 = vadd.f32 %v2075, %v2528
        %2530 = vmatprep.mubr.bf16.mxu0 %v2023
        %2531 = vmatmul.mubr.bf16.gmra.mrb[0].mxu0 %v2022
        %v2532 = vpop.f32.mrb[0].mxu0
        %v2533 = vadd.f32 %v2071, %v2532
        %v2534 = vpop.f32.mrb[0].mxu0
        %v2535 = vadd.f32 %v2075, %v2534
        %v2536 = vpop.f32.mrb[0].mxu0
        %v2537 = vadd.f32 %v2071, %v2536
        %v2538 = vpop.f32.mrb[0].mxu0
        %v2539 = vadd.f32 %v2075, %v2538
        %2540 = vmatprep.mubr.bf16.mxu0 %v2025
        %2541 = vmatmul.mubr.bf16.gmra.mrb[0].mxu0 %v2024
        %v2542 = vpop.f32.mrb[0].mxu0
        %v2543 = vadd.f32 %v2071, %v2542
        %v2544 = vpop.f32.mrb[0].mxu0
        %v2545 = vadd.f32 %v2075, %v2544
        %v2546 = vpop.f32.mrb[0].mxu0
        %v2547 = vadd.f32 %v2071, %v2546
        %v2548 = vpop.f32.mrb[0].mxu0
        %v2549 = vadd.f32 %v2075, %v2548
        %2550 = vmatprep.mubr.bf16.mxu0 %v2027
        %2551 = vmatmul.mubr.bf16.gmra.mrb[0].mxu0 %v2026
        %v2552 = vpop.f32.mrb[0].mxu0
        %v2553 = vadd.f32 %v2071, %v2552
        %v2554 = vpop.f32.mrb[0].mxu0
        %v2555 = vadd.f32 %v2075, %v2554
        %v2556 = vpop.f32.mrb[0].mxu0
        %v2557 = vadd.f32 %v2071, %v2556
        %v2558 = vpop.f32.mrb[0].mxu0
        %v2559 = vadd.f32 %v2075, %v2558
        %2560 = vmatprep.mubr.bf16.mxu0 %v2029
        %2561 = vmatmul.mubr.bf16.gmra.mrb[0].mxu0 %v2028
        %v2562 = vpop.f32.mrb[0].mxu0
        %v2563 = vadd.f32 %v2071, %v2562
        %v2564 = vpop.f32.mrb[0].mxu0
        %v2565 = vadd.f32 %v2075, %v2564
        %v2566 = vpop.f32.mrb[0].mxu0
        %v2567 = vadd.f32 %v2071, %v2566
        %v2568 = vpop.f32.mrb[0].mxu0
        %v2569 = vadd.f32 %v2075, %v2568
        %2570 = vmatprep.mubr.bf16.mxu0 %v2031
        %2571 = vmatmul.mubr.bf16.gmra.mrb[0].mxu0 %v2030
        %v2572 = vpop.f32.mrb[0].mxu0
        %v2573 = vadd.f32 %v2071, %v2572
        %v2574 = vpop.f32.mrb[0].mxu0
        %v2575 = vadd.f32 %v2075, %v2574
        %v2576 = vpop.f32.mrb[0].mxu0
        %v2577 = vadd.f32 %v2071, %v2576
        %v2578 = vpop.f32.mrb[0].mxu0
        %v2579 = vadd.f32 %v2075, %v2578
        %2580 = vmatprep.mubr.bf16.mxu0 %v2033
        %2581 = vmatmul.mubr.bf16.gmra.mrb[0].mxu0 %v2032
        %v2582 = vpop.f32.mrb[0].mxu0
        %v2583 = vadd.f32 %v2071, %v2582
        %v2584 = vpop.f32.mrb[0].mxu0
        %v2585 = vadd.f32 %v2075, %v2584
        %v2586 = vpop.f32.mrb[0].mxu0
        %v2587 = vadd.f32 %v2071, %v2586
        %v2588 = vpop.f32.mrb[0].mxu0
        %v2589 = vadd.f32 %v2075, %v2588
        %2590 = vdwg.mxu0
        %2591 = vst [vmem:[%s341] sm:$0xff] %v2273
        %2592 = vst [vmem:[%s341 + $0x8] sm:$0xff] %v2275
        %2593 = vst [vmem:[%s341 + $0x10] sm:$0xff] %v2277
        %2594 = vst [vmem:[%s341 + $0x18] sm:$0xff] %v2279
        %2595 = vst [vmem:[%s341 + $0x20] sm:$0xff] %v2283
        %2596 = vst [vmem:[%s341 + $0x28] sm:$0xff] %v2285
        %2597 = vst [vmem:[%s341 + $0x30] sm:$0xff] %v2287
        %2598 = vst [vmem:[%s341 + $0x38] sm:$0xff] %v2289
        %2599 = vst [vmem:[%s341 + $0x40] sm:$0xff] %v2293
        %2600 = vst [vmem:[%s341 + $0x48] sm:$0xff] %v2295
        %2601 = vst [vmem:[%s341 + $0x50] sm:$0xff] %v2297
        %2602 = vst [vmem:[%s341 + $0x58] sm:$0xff] %v2299
        %2603 = vst [vmem:[%s341 + $0x60] sm:$0xff] %v2303
        %2604 = vst [vmem:[%s341 + $0x68] sm:$0xff] %v2305
        %2605 = vst [vmem:[%s341 + $0x70] sm:$0xff] %v2307
        %2606 = vst [vmem:[%s341 + $0x78] sm:$0xff] %v2309
        %2607 = vst [vmem:[%s341 + $0x80] sm:$0xff] %v2313
        %2608 = vst [vmem:[%s341 + $0x88] sm:$0xff] %v2315
        %2609 = vst [vmem:[%s341 + $0x90] sm:$0xff] %v2317
        %2610 = vst [vmem:[%s341 + $0x98] sm:$0xff] %v2319
        %2611 = vst [vmem:[%s341 + $0xa0] sm:$0xff] %v2323
        %2612 = vst [vmem:[%s341 + $0xa8] sm:$0xff] %v2325
        %2613 = vst [vmem:[%s341 + $0xb0] sm:$0xff] %v2327
        %2614 = vst [vmem:[%s341 + $0xb8] sm:$0xff] %v2329
        %2615 = vst [vmem:[%s341 + $0xc0] sm:$0xff] %v2333
        %2616 = vst [vmem:[%s341 + $0xc8] sm:$0xff] %v2335
        %2617 = vst [vmem:[%s341 + $0xd0] sm:$0xff] %v2337
        %2618 = vst [vmem:[%s341 + $0xd8] sm:$0xff] %v2339
        %2619 = vst [vmem:[%s341 + $0xe0] sm:$0xff] %v2343
        %2620 = vst [vmem:[%s341 + $0xe8] sm:$0xff] %v2345
        %2621 = vst [vmem:[%s341 + $0xf0] sm:$0xff] %v2347
        %2622 = vst [vmem:[%s341 + $0xf8] sm:$0xff] %v2349
        %2623 = vst [vmem:[%s341 + $0x100] sm:$0xff] %v2353
        %2624 = vst [vmem:[%s341 + $0x108] sm:$0xff] %v2355
        %2625 = vst [vmem:[%s341 + $0x110] sm:$0xff] %v2357
        %2626 = vst [vmem:[%s341 + $0x118] sm:$0xff] %v2359
        %2627 = vst [vmem:[%s341 + $0x120] sm:$0xff] %v2363
        %2628 = vst [vmem:[%s341 + $0x128] sm:$0xff] %v2365
        %2629 = vst [vmem:[%s341 + $0x130] sm:$0xff] %v2367
        %2630 = vst [vmem:[%s341 + $0x138] sm:$0xff] %v2369
        %2631 = vst [vmem:[%s341 + $0x140] sm:$0xff] %v2373
        %2632 = vst [vmem:[%s341 + $0x148] sm:$0xff] %v2375
        %2633 = vst [vmem:[%s341 + $0x150] sm:$0xff] %v2377
        %2634 = vst [vmem:[%s341 + $0x158] sm:$0xff] %v2379
        %2635 = vst [vmem:[%s341 + $0x160] sm:$0xff] %v2383
        %2636 = vst [vmem:[%s341 + $0x168] sm:$0xff] %v2385
        %2637 = vst [vmem:[%s341 + $0x170] sm:$0xff] %v2387
        %2638 = vst [vmem:[%s341 + $0x178] sm:$0xff] %v2389
        %2639 = vst [vmem:[%s341 + $0x180] sm:$0xff] %v2393
        %2640 = vst [vmem:[%s341 + $0x188] sm:$0xff] %v2395
        %2641 = vst [vmem:[%s341 + $0x190] sm:$0xff] %v2397
        %2642 = vst [vmem:[%s341 + $0x198] sm:$0xff] %v2399
        %2643 = vst [vmem:[%s341 + $0x1a0] sm:$0xff] %v2403
        %2644 = vst [vmem:[%s341 + $0x1a8] sm:$0xff] %v2405
        %2645 = vst [vmem:[%s341 + $0x1b0] sm:$0xff] %v2407
        %2646 = vst [vmem:[%s341 + $0x1b8] sm:$0xff] %v2409
        %2647 = vst [vmem:[%s341 + $0x1c0] sm:$0xff] %v2413
        %2648 = vst [vmem:[%s341 + $0x1c8] sm:$0xff] %v2415
        %2649 = vst [vmem:[%s341 + $0x1d0] sm:$0xff] %v2417
        %2650 = vst [vmem:[%s341 + $0x1d8] sm:$0xff] %v2419
        %2651 = vst [vmem:[%s341 + $0x1e0] sm:$0xff] %v2423
        %2652 = vst [vmem:[%s341 + $0x1e8] sm:$0xff] %v2425
        %2653 = vst [vmem:[%s341 + $0x1f0] sm:$0xff] %v2427
        %2654 = vst [vmem:[%s341 + $0x1f8] sm:$0xff] %v2429
        %2655 = vst [vmem:[%s341 + $0x200] sm:$0xff] %v2433
        %2656 = vst [vmem:[%s341 + $0x208] sm:$0xff] %v2435
        %2657 = vst [vmem:[%s341 + $0x210] sm:$0xff] %v2437
        %2658 = vst [vmem:[%s341 + $0x218] sm:$0xff] %v2439
        %2659 = vst [vmem:[%s341 + $0x220] sm:$0xff] %v2443
        %2660 = vst [vmem:[%s341 + $0x228] sm:$0xff] %v2445
        %2661 = vst [vmem:[%s341 + $0x230] sm:$0xff] %v2447
        %2662 = vst [vmem:[%s341 + $0x238] sm:$0xff] %v2449
        %2663 = vst [vmem:[%s341 + $0x240] sm:$0xff] %v2453
        %2664 = vst [vmem:[%s341 + $0x248] sm:$0xff] %v2455
        %2665 = vst [vmem:[%s341 + $0x250] sm:$0xff] %v2457
        %2666 = vst [vmem:[%s341 + $0x258] sm:$0xff] %v2459
        %2667 = vst [vmem:[%s341 + $0x260] sm:$0xff] %v2463
        %2668 = vst [vmem:[%s341 + $0x268] sm:$0xff] %v2465
        %2669 = vst [vmem:[%s341 + $0x270] sm:$0xff] %v2467
        %2670 = vst [vmem:[%s341 + $0x278] sm:$0xff] %v2469
        %2671 = vst [vmem:[%s341 + $0x280] sm:$0xff] %v2473
        %2672 = vst [vmem:[%s341 + $0x288] sm:$0xff] %v2475
        %2673 = vst [vmem:[%s341 + $0x290] sm:$0xff] %v2477
        %2674 = vst [vmem:[%s341 + $0x298] sm:$0xff] %v2479
        %2675 = vst [vmem:[%s341 + $0x2a0] sm:$0xff] %v2483
        %2676 = vst [vmem:[%s341 + $0x2a8] sm:$0xff] %v2485
        %2677 = vst [vmem:[%s341 + $0x2b0] sm:$0xff] %v2487
        %2678 = vst [vmem:[%s341 + $0x2b8] sm:$0xff] %v2489
        %2679 = vst [vmem:[%s341 + $0x2c0] sm:$0xff] %v2493
        %2680 = vst [vmem:[%s341 + $0x2c8] sm:$0xff] %v2495
        %2681 = vst [vmem:[%s341 + $0x2d0] sm:$0xff] %v2497
        %2682 = vst [vmem:[%s341 + $0x2d8] sm:$0xff] %v2499
        %2683 = vst [vmem:[%s341 + $0x2e0] sm:$0xff] %v2503
        %2684 = vst [vmem:[%s341 + $0x2e8] sm:$0xff] %v2505
        %2685 = vst [vmem:[%s341 + $0x2f0] sm:$0xff] %v2507
        %2686 = vst [vmem:[%s341 + $0x2f8] sm:$0xff] %v2509
        %2687 = vst [vmem:[%s341 + $0x300] sm:$0xff] %v2513
        %2688 = vst [vmem:[%s341 + $0x308] sm:$0xff] %v2515
        %2689 = vst [vmem:[%s341 + $0x310] sm:$0xff] %v2517
        %2690 = vst [vmem:[%s341 + $0x318] sm:$0xff] %v2519
        %2691 = vst [vmem:[%s341 + $0x320] sm:$0xff] %v2523
        %2692 = vst [vmem:[%s341 + $0x328] sm:$0xff] %v2525
        %2693 = vst [vmem:[%s341 + $0x330] sm:$0xff] %v2527
        %2694 = vst [vmem:[%s341 + $0x338] sm:$0xff] %v2529
        %2695 = vst [vmem:[%s341 + $0x340] sm:$0xff] %v2533
        %2696 = vst [vmem:[%s341 + $0x348] sm:$0xff] %v2535
        %2697 = vst [vmem:[%s341 + $0x350] sm:$0xff] %v2537
        %2698 = vst [vmem:[%s341 + $0x358] sm:$0xff] %v2539
        %2699 = vst [vmem:[%s341 + $0x360] sm:$0xff] %v2543
        %2700 = vst [vmem:[%s341 + $0x368] sm:$0xff] %v2545
        %2701 = vst [vmem:[%s341 + $0x370] sm:$0xff] %v2547
        %2702 = vst [vmem:[%s341 + $0x378] sm:$0xff] %v2549
        %2703 = vst [vmem:[%s341 + $0x380] sm:$0xff] %v2553
        %2704 = vst [vmem:[%s341 + $0x388] sm:$0xff] %v2555
        %2705 = vst [vmem:[%s341 + $0x390] sm:$0xff] %v2557
        %2706 = vst [vmem:[%s341 + $0x398] sm:$0xff] %v2559
        %2707 = vst [vmem:[%s341 + $0x3a0] sm:$0xff] %v2563
        %2708 = vst [vmem:[%s341 + $0x3a8] sm:$0xff] %v2565
        %2709 = vst [vmem:[%s341 + $0x3b0] sm:$0xff] %v2567
        %2710 = vst [vmem:[%s341 + $0x3b8] sm:$0xff] %v2569
        %2711 = vst [vmem:[%s341 + $0x3c0] sm:$0xff] %v2573
        %2712 = vst [vmem:[%s341 + $0x3c8] sm:$0xff] %v2575
        %2713 = vst [vmem:[%s341 + $0x3d0] sm:$0xff] %v2577
        %2714 = vst [vmem:[%s341 + $0x3d8] sm:$0xff] %v2579
        %2715 = vst [vmem:[%s341 + $0x3e0] sm:$0xff] %v2583
        %2716 = vst [vmem:[%s341 + $0x3e8] sm:$0xff] %v2585
        %2717 = vst [vmem:[%s341 + $0x3f0] sm:$0xff] %v2587
        %2718 = vst [vmem:[%s341 + $0x3f8] sm:$0xff] %v2589
        %s2719 = sand.u32 %s186, 1
        %s2720 = scalar_lea.sflag [#allocation4], %s2719
        %s2721 = sand.u32 %s186, 1
        %s2722 = smul.addr %s2721, 1024
        %s2723 = scalar_lea.vmem [#allocation10], %s2722
        // Predicated region
        $region65: #{mlp3_forward.1} parent=47 // pred_check
          %p2724 = pneg %p196
        $region66: #{mlp3_forward.1} parent=47 // pred_check_branch
          %2726 = sbr.rel (%p2724) target = $region68
        $region67: #{mlp3_forward.1} parent=47 // pred_region
          %s2727 = smul.u32 64, %s26
          %s2729 = ssub.s32 16384, 16384
          %2730 = vsyncadd %s2720, %s2729
          %s2731 = smul.addr %s2727, 2
          %s2732 = smul.addr %s2731, 128
          %s2733 = scalar_lea.hbm %s7, %s2732
          %s2734 = sshll.u32 %s2723, 4
          %s2735 = int_to_ptr.vmem [resolvable:$true] %s2734
          %2740 = dma.vmem_to_hbm [thread:$0]  %s2735, 16384, %s2733, %s2720, 256, 256, 16
        $region68: #{mlp3_forward.1} parent=47 // pred_fallthru
          _
      $region48: #{mlp3_forward.1} parent=5 // pred_fallthru
        _
      %p2741 = scmp.le.s32.totalorder 2, %s21
      // Predicated region
      $region69: #{mlp3_forward.1} parent=5 // pred_check
        %p2742 = pneg %p2741
      $region70: #{mlp3_forward.1} parent=5 // pred_check_branch
        %2744 = sbr.rel (%p2742) target = $region72
      $region71: #{mlp3_forward.1} parent=5 // pred_region
        %s2745 = ssub.s32 %s21, 2
        // Predicated region
        $region73: #{mlp3_forward.1} parent=71 // pred_check
          %p2746 = pneg %p202
        $region74: #{mlp3_forward.1} parent=71 // pred_check_branch
          %2748 = sbr.rel (%p2746) target = $region76
        $region75: #{mlp3_forward.1} parent=71 // pred_region
          %s2749 = sand.u32 %s187, 1
          %s2750 = scalar_lea.sflag [#allocation4], %s2749
          %s2751 = sand.u32 %s187, 1
          %s2752 = smul.addr %s2751, 1024
          %s2753 = scalar_lea.vmem [#allocation10], %s2752
          %2754 = dma.done %s2750, 16384
        $region76: #{mlp3_forward.1} parent=71 // pred_fallthru
          _
      $region72: #{mlp3_forward.1} parent=5 // pred_fallthru
        _
    $region6: #{mlp3_forward.1} parent=1 // loop_footer
      %s25 = sadd.s32 1, %s21
    $region7: #{mlp3_forward.1} parent=1 // loop_footer_branch
      %20 = sbr.rel target = $region3
    $region8: #{mlp3_forward.1} parent=1 // loop_exit
      _
    %2755 = vsyncpa [#allocation3], 1
    %s2756 = scalar_lea.sflag [#allocation3], 1
    %2757 = vsyncpa %s2756, 1
    %2758 = vsyncpa [#allocation6], 1
    %2759 = vsyncpa [#allocation9], 1
    %2760 = vsyncpa [#allocation4], 1
    %s2761 = scalar_lea.sflag [#allocation4], 1
    %2762 = vsyncpa %s2761, 1

</llo_original>
